<compile_context>
chip_gen: v6e
topology: v6e:2x2x1
jax: 0.10.0
libtpu: 0.0.40
codegen_flags: <defaults>
</compile_context>

<pallas_src>
import functools

import jax
import jax.numpy as jnp
from jax.experimental import pallas as pl
from jax.experimental.pallas import tpu as pltpu

_EPS = 1e-5


def _round_up(x, m):
    return ((x + m - 1) // m) * m


def _fused_mlp_kernel(
    # inputs
    x_ref,
    w0_ref, b0_ref, g0_ref, be0_ref,
    w1_ref, b1_ref, g1_ref, be1_ref,
    w2_ref, b2_ref, g2_ref, be2_ref,
    w3_ref, b3_ref,
    # output
    out_ref,
    # scratch: full-batch pre-activations per hidden layer + BN stat accumulators
    h0_ref, h1_ref, h2_ref,
    s0_ref, q0_ref, s1_ref, q1_ref, s2_ref, q2_ref,
    *, n_rows, tm,
):
    stage = pl.program_id(0)   # 0..3: one stage per layer (outer -> full-batch stats ready)
    tile = pl.program_id(1)    # batch tile (inner)
    row0 = pl.multiple_of(tile * tm, tm)

    # Valid (non-padded) rows of this tile: padded rows must not pollute BN stats.
    row_ids = jax.lax.broadcasted_iota(jnp.int32, (tm, 1), 0) + tile * tm
    valid = (row_ids < n_rows).astype(jnp.float32)
    inv_n = 1.0 / float(n_rows)

    @pl.when(jnp.logical_and(stage == 0, tile == 0))
    def _init_stats():
        for r in (s0_ref, q0_ref, s1_ref, q1_ref, s2_ref, q2_ref):
            r[...] = jnp.zeros_like(r)

    def _accumulate(y, s_ref, q_ref):
        # One-pass statistics: per-feature sum and sum-of-squares over valid rows.
        ym = y * valid
        s_ref[...] += jnp.sum(ym, axis=0, keepdims=True)
        q_ref[...] += jnp.sum(ym * ym, axis=0, keepdims=True)

    def _bn_relu(y, s_ref, q_ref, g_ref, be_ref):
        mean = s_ref[...] * inv_n
        var = q_ref[...] * inv_n - mean * mean        # biased variance (train mode)
        y_hat = (y - mean) * jax.lax.rsqrt(var + _EPS)
        return jnp.maximum(y_hat * g_ref[...] + be_ref[...], 0.0)

    @pl.when(stage == 0)
    def _stage0():
        y = jnp.dot(x_ref[...], w0_ref[...], preferred_element_type=jnp.float32)
        y = y + b0_ref[...]
        h0_ref[pl.ds(row0, tm), :] = y
        _accumulate(y, s0_ref, q0_ref)

    @pl.when(stage == 1)
    def _stage1():
        a = _bn_relu(h0_ref[pl.ds(row0, tm), :], s0_ref, q0_ref, g0_ref, be0_ref)
        y = jnp.dot(a, w1_ref[...], preferred_element_type=jnp.float32) + b1_ref[...]
        h1_ref[pl.ds(row0, tm), :] = y
        _accumulate(y, s1_ref, q1_ref)

    @pl.when(stage == 2)
    def _stage2():
        a = _bn_relu(h1_ref[pl.ds(row0, tm), :], s1_ref, q1_ref, g1_ref, be1_ref)
        y = jnp.dot(a, w2_ref[...], preferred_element_type=jnp.float32) + b2_ref[...]
        h2_ref[pl.ds(row0, tm), :] = y
        _accumulate(y, s2_ref, q2_ref)

    @pl.when(stage == 3)
    def _stage3():
        a = _bn_relu(h2_ref[pl.ds(row0, tm), :], s2_ref, q2_ref, g2_ref, be2_ref)
        out_ref[...] = (
            jnp.dot(a, w3_ref[...], preferred_element_type=jnp.float32) + b3_ref[...]
        )


def nn_regression_forward(x, params, *, tm_max=256):
    """Fused forward pass (training-mode BatchNorm, biased variance, eps=1e-5)."""
    x = x.astype(jnp.float32)          # x = x.float()
    n, fin = x.shape
    (w0, b0, g0, be0), (w1, b1, g1, be1), (w2, b2, g2, be2), (w3, b3) = params
    d0, d1, d2 = w0.shape[1], w1.shape[1], w2.shape[1]
    fout = w3.shape[1]

    # Lane-pad the narrow final layer to >=128 output columns (unmasked stores).
    fout_p = _round_up(max(fout, 128), 128)
    w3p = jnp.zeros((w3.shape[0], fout_p), jnp.float32).at[:, :fout].set(w3)
    b3p = jnp.zeros((1, fout_p), jnp.float32).at[:, :fout].set(b3)

    # Batch tiling (sublane-aligned).  Batch is zero-padded to a tile multiple;
    # padded rows are masked out of the BN statistics inside the kernel.
    tm = min(int(tm_max), _round_up(n, 8))
    n_pad = _round_up(n, tm)
    if n_pad != n:
        x = jnp.pad(x, ((0, n_pad - n), (0, 0)))
    n_tiles = n_pad // tm

    const = lambda s, t: (0, 0)      # weights/params stay VMEM-resident
    per_tile = lambda s, t: (t, 0)   # batch-tiled arrays

    kernel = functools.partial(_fused_mlp_kernel, n_rows=n, tm=tm)

    out = pl.pallas_call(
        kernel,
        out_shape=jax.ShapeDtypeStruct((n_pad, fout_p), jnp.float32),
        grid_spec=pltpu.PrefetchScalarGridSpec(
            num_scalar_prefetch=0,
            # stage outer, batch tile inner: every tile of a layer contributes
            # its stats before the next stage normalizes with them.
            grid=(4, n_tiles),
            in_specs=[
                pl.BlockSpec((tm, fin), per_tile),
                pl.BlockSpec(w0.shape, const), pl.BlockSpec(b0.shape, const),
                pl.BlockSpec(g0.shape, const), pl.BlockSpec(be0.shape, const),
                pl.BlockSpec(w1.shape, const), pl.BlockSpec(b1.shape, const),
                pl.BlockSpec(g1.shape, const), pl.BlockSpec(be1.shape, const),
                pl.BlockSpec(w2.shape, const), pl.BlockSpec(b2.shape, const),
                pl.BlockSpec(g2.shape, const), pl.BlockSpec(be2.shape, const),
                pl.BlockSpec(w3p.shape, const), pl.BlockSpec(b3p.shape, const),
            ],
            out_specs=pl.BlockSpec((tm, fout_p), per_tile),
            scratch_shapes=[
                pltpu.VMEM((n_pad, d0), jnp.float32),   # layer-0 pre-activations
                pltpu.VMEM((n_pad, d1), jnp.float32),   # layer-1 pre-activations
                pltpu.VMEM((n_pad, d2), jnp.float32),   # layer-2 pre-activations
                pltpu.VMEM((1, d0), jnp.float32), pltpu.VMEM((1, d0), jnp.float32),
                pltpu.VMEM((1, d1), jnp.float32), pltpu.VMEM((1, d1), jnp.float32),
                pltpu.VMEM((1, d2), jnp.float32), pltpu.VMEM((1, d2), jnp.float32),
            ],
        ),
        compiler_params=pltpu.CompilerParams(
            # Both axes must be "arbitrary": stage is a dependency chain and the
            # tile axis accumulates BN stats into shared VMEM scratch (splitting
            # it across TensorCores would give per-core partial statistics).
            dimension_semantics=("arbitrary", "arbitrary"),
            vmem_limit_bytes=48 * 1024 * 1024,
        ),
    )(x, w0, b0, g0, be0, w1, b1, g1, be1, w2, b2, g2, be2, w3p, b3p)

    return out[:n, :fout]


def init_params(key, input_size, output_size):
    """Deterministic init mirroring the PyTorch module: kaiming_normal_
    (fan_in, ReLU gain) on Linear weights, zero biases, BN gamma=1, beta=0."""
    dims = [input_size, 64, 256, 512, output_size]
    params = []
    keys = jax.random.split(key, len(dims) - 1)
    for i, (fin, fout) in enumerate(zip(dims[:-1], dims[1:])):
        std = (2.0 / fin) ** 0.5
        w = std * jax.random.normal(keys[i], (fin, fout), dtype=jnp.float32)
        b = jnp.zeros((1, fout), dtype=jnp.float32)
        if i < len(dims) - 2:   # hidden layers have BatchNorm
            gamma = jnp.ones((1, fout), dtype=jnp.float32)
            beta = jnp.zeros((1, fout), dtype=jnp.float32)
            params.append((w, b, gamma, beta))
        else:
            params.append((w, b))
    return params


def _reference_forward(x, params):
    # Pure-JAX reference (PyTorch training-mode BN semantics) for a sanity check.
    x = x.astype(jnp.float32)
    for w, b, gamma, beta in params[:-1]:
        y = x @ w + b
        mean = jnp.mean(y, axis=0, keepdims=True)
        var = jnp.mean((y - mean) ** 2, axis=0, keepdims=True)
        y = (y - mean) * jax.lax.rsqrt(var + _EPS) * gamma + beta
        x = jnp.maximum(y, 0.0)
    w, b = params[-1]
    return x @ w + b


if __name__ == "__main__":
    key = jax.random.PRNGKey(0)
    k_x, k_p = jax.random.split(key)

    # Small shapes consistent with the module; batch=50 with tm_max=32 exercises
    # multi-tile BN-stat accumulation and padded-row masking.
    batch, input_size, output_size = 50, 16, 4
    x = jax.random.normal(k_x, (batch, input_size), dtype=jnp.float32)
    params = init_params(k_p, input_size, output_size)

    fwd = jax.jit(functools.partial(nn_regression_forward, tm_max=32))
    out = jax.block_until_ready(fwd(x, params))

    ref = _reference_forward(x, params)
    assert out.shape == (batch, output_size)
    assert jnp.allclose(out, ref, atol=1e-3, rtol=1e-3), "mismatch vs reference"

    print("KERNEL_OK")
</pallas_src>

<mosaic_0001>
module attributes {stable_mosaic.version = 11 : i64} {
  func.func @_fused_mlp_kernel(%arg0: i32, %arg1: i32, %arg2: memref<32x16xf32, #tpu.memory_space<vmem>>, %arg3: memref<16x64xf32, #tpu.memory_space<vmem>>, %arg4: memref<1x64xf32, #tpu.memory_space<vmem>>, %arg5: memref<1x64xf32, #tpu.memory_space<vmem>>, %arg6: memref<1x64xf32, #tpu.memory_space<vmem>>, %arg7: memref<64x256xf32, #tpu.memory_space<vmem>>, %arg8: memref<1x256xf32, #tpu.memory_space<vmem>>, %arg9: memref<1x256xf32, #tpu.memory_space<vmem>>, %arg10: memref<1x256xf32, #tpu.memory_space<vmem>>, %arg11: memref<256x512xf32, #tpu.memory_space<vmem>>, %arg12: memref<1x512xf32, #tpu.memory_space<vmem>>, %arg13: memref<1x512xf32, #tpu.memory_space<vmem>>, %arg14: memref<1x512xf32, #tpu.memory_space<vmem>>, %arg15: memref<512x128xf32, #tpu.memory_space<vmem>>, %arg16: memref<1x128xf32, #tpu.memory_space<vmem>>, %arg17: memref<32x128xf32, #tpu.memory_space<vmem>>, %arg18: memref<64x64xf32, #tpu.memory_space<vmem>>, %arg19: memref<64x256xf32, #tpu.memory_space<vmem>>, %arg20: memref<64x512xf32, #tpu.memory_space<vmem>>, %arg21: memref<1x64xf32, #tpu.memory_space<vmem>>, %arg22: memref<1x64xf32, #tpu.memory_space<vmem>>, %arg23: memref<1x256xf32, #tpu.memory_space<vmem>>, %arg24: memref<1x256xf32, #tpu.memory_space<vmem>>, %arg25: memref<1x512xf32, #tpu.memory_space<vmem>>, %arg26: memref<1x512xf32, #tpu.memory_space<vmem>>) attributes {dimension_semantics = [#tpu.dimension_semantics<arbitrary>, #tpu.dimension_semantics<arbitrary>], iteration_bounds = array<i64: 4, 2>, scalar_prefetch = 0 : i64, scratch_operands = 9 : i64, tpu.core_type = #tpu.core_type<tc>, window_params = [{transform_indices = @transform_0, window_bounds = array<i64: 32, 16>}, {pipeline_mode = #tpu.pipeline_mode<synchronous>, transform_indices = @transform_1, window_bounds = array<i64: 16, 64>}, {pipeline_mode = #tpu.pipeline_mode<synchronous>, transform_indices = @transform_2, window_bounds = array<i64: 1, 64>}, {pipeline_mode = #tpu.pipeline_mode<synchronous>, transform_indices = @transform_3, window_bounds = array<i64: 1, 64>}, {pipeline_mode = #tpu.pipeline_mode<synchronous>, transform_indices = @transform_4, window_bounds = array<i64: 1, 64>}, {pipeline_mode = #tpu.pipeline_mode<synchronous>, transform_indices = @transform_5, window_bounds = array<i64: 64, 256>}, {pipeline_mode = #tpu.pipeline_mode<synchronous>, transform_indices = @transform_6, window_bounds = array<i64: 1, 256>}, {pipeline_mode = #tpu.pipeline_mode<synchronous>, transform_indices = @transform_7, window_bounds = array<i64: 1, 256>}, {pipeline_mode = #tpu.pipeline_mode<synchronous>, transform_indices = @transform_8, window_bounds = array<i64: 1, 256>}, {pipeline_mode = #tpu.pipeline_mode<synchronous>, transform_indices = @transform_9, window_bounds = array<i64: 256, 512>}, {pipeline_mode = #tpu.pipeline_mode<synchronous>, transform_indices = @transform_10, window_bounds = array<i64: 1, 512>}, {pipeline_mode = #tpu.pipeline_mode<synchronous>, transform_indices = @transform_11, window_bounds = array<i64: 1, 512>}, {pipeline_mode = #tpu.pipeline_mode<synchronous>, transform_indices = @transform_12, window_bounds = array<i64: 1, 512>}, {pipeline_mode = #tpu.pipeline_mode<synchronous>, transform_indices = @transform_13, window_bounds = array<i64: 512, 128>}, {pipeline_mode = #tpu.pipeline_mode<synchronous>, transform_indices = @transform_14, window_bounds = array<i64: 1, 128>}, {transform_indices = @transform_15, window_bounds = array<i64: 32, 128>}]} {
    %c32_i32 = arith.constant 32 : i32
    %0 = arith.muli %arg1, %c32_i32 : i32
    %1 = tpu.assume_multiple %0, 32 : i32
    %2 = tpu.iota {dimensions = array<i32: 0>} : vector<32x1xi32>
    %c32_i32_0 = arith.constant 32 : i32
    %3 = arith.muli %arg1, %c32_i32_0 : i32
    %4 = vector.broadcast %3 : i32 to vector<32x1xi32>
    %5 = arith.addi %2, %4 : vector<32x1xi32>
    %c50_i32 = arith.constant 50 : i32
    %6 = vector.broadcast %c50_i32 : i32 to vector<32x1xi32>
    %7 = arith.cmpi slt, %5, %6 : vector<32x1xi32>
    %8 = arith.extui %7 : vector<32x1xi1> to vector<32x1xi32>
    %9 = arith.sitofp %8 : vector<32x1xi32> to vector<32x1xf32>
    %c0_i32 = arith.constant 0 : i32
    %10 = arith.cmpi eq, %arg0, %c0_i32 : i32
    %c0_i32_1 = arith.constant 0 : i32
    %11 = arith.cmpi eq, %arg1, %c0_i32_1 : i32
    %12 = arith.andi %10, %11 : i1
    %13 = arith.extui %12 : i1 to i32
    %c0_i32_2 = arith.constant 0 : i32
    %14 = arith.cmpi ne, %13, %c0_i32_2 : i32
    scf.if %14 {
      %cst = arith.constant 0.000000e+00 : f32
      %27 = vector.broadcast %cst : f32 to vector<1x64xf32>
      %c0 = arith.constant 0 : index
      %c0_8 = arith.constant 0 : index
      %28 = vector.load %arg21[%c0, %c0_8] : memref<1x64xf32, #tpu.memory_space<vmem>>, vector<1x64xf32>
      tpu.vector_store %arg21[%c0, %c0_8], %27 {strides = array<i32>} : memref<1x64xf32, #tpu.memory_space<vmem>>, vector<1x64xf32>,
      %cst_9 = arith.constant 0.000000e+00 : f32
      %29 = vector.broadcast %cst_9 : f32 to vector<1x64xf32>
      %c0_10 = arith.constant 0 : index
      %c0_11 = arith.constant 0 : index
      %30 = vector.load %arg22[%c0_10, %c0_11] : memref<1x64xf32, #tpu.memory_space<vmem>>, vector<1x64xf32>
      tpu.vector_store %arg22[%c0_10, %c0_11], %29 {strides = array<i32>} : memref<1x64xf32, #tpu.memory_space<vmem>>, vector<1x64xf32>,
      %cst_12 = arith.constant 0.000000e+00 : f32
      %31 = vector.broadcast %cst_12 : f32 to vector<1x256xf32>
      %c0_13 = arith.constant 0 : index
      %c0_14 = arith.constant 0 : index
      %32 = vector.load %arg23[%c0_13, %c0_14] : memref<1x256xf32, #tpu.memory_space<vmem>>, vector<1x256xf32>
      tpu.vector_store %arg23[%c0_13, %c0_14], %31 {strides = array<i32>} : memref<1x256xf32, #tpu.memory_space<vmem>>, vector<1x256xf32>,
      %cst_15 = arith.constant 0.000000e+00 : f32
      %33 = vector.broadcast %cst_15 : f32 to vector<1x256xf32>
      %c0_16 = arith.constant 0 : index
      %c0_17 = arith.constant 0 : index
      %34 = vector.load %arg24[%c0_16, %c0_17] : memref<1x256xf32, #tpu.memory_space<vmem>>, vector<1x256xf32>
      tpu.vector_store %arg24[%c0_16, %c0_17], %33 {strides = array<i32>} : memref<1x256xf32, #tpu.memory_space<vmem>>, vector<1x256xf32>,
      %cst_18 = arith.constant 0.000000e+00 : f32
      %35 = vector.broadcast %cst_18 : f32 to vector<1x512xf32>
      %c0_19 = arith.constant 0 : index
      %c0_20 = arith.constant 0 : index
      %36 = vector.load %arg25[%c0_19, %c0_20] : memref<1x512xf32, #tpu.memory_space<vmem>>, vector<1x512xf32>
      tpu.vector_store %arg25[%c0_19, %c0_20], %35 {strides = array<i32>} : memref<1x512xf32, #tpu.memory_space<vmem>>, vector<1x512xf32>,
      %cst_21 = arith.constant 0.000000e+00 : f32
      %37 = vector.broadcast %cst_21 : f32 to vector<1x512xf32>
      %c0_22 = arith.constant 0 : index
      %c0_23 = arith.constant 0 : index
      %38 = vector.load %arg26[%c0_22, %c0_23] : memref<1x512xf32, #tpu.memory_space<vmem>>, vector<1x512xf32>
      tpu.vector_store %arg26[%c0_22, %c0_23], %37 {strides = array<i32>} : memref<1x512xf32, #tpu.memory_space<vmem>>, vector<1x512xf32>,
    } else {
    }
    %c0_i32_3 = arith.constant 0 : i32
    %15 = arith.cmpi eq, %arg0, %c0_i32_3 : i32
    %16 = arith.extui %15 : i1 to i32
    %c0_i32_4 = arith.constant 0 : i32
    %17 = arith.cmpi ne, %16, %c0_i32_4 : i32
    scf.if %17 {
      %c0 = arith.constant 0 : index
      %c0_8 = arith.constant 0 : index
      %27 = vector.load %arg2[%c0, %c0_8] : memref<32x16xf32, #tpu.memory_space<vmem>>, vector<32x16xf32>
      %c0_9 = arith.constant 0 : index
      %c0_10 = arith.constant 0 : index
      %28 = vector.load %arg3[%c0_9, %c0_10] : memref<16x64xf32, #tpu.memory_space<vmem>>, vector<16x64xf32>
      %cst = arith.constant dense<0.000000e+00> : vector<32x64xf32>
      %29 = tpu.matmul %27, %28, %cst {dimension_numbers = #tpu.dot_dimension_numbers<[1], [0], [0], [1], [0, 0, 1, 1], [], []>} : vector<32x16xf32>, vector<16x64xf32>, vector<32x64xf32> -> vector<32x64xf32>
      %c0_11 = arith.constant 0 : index
      %c0_12 = arith.constant 0 : index
      %30 = vector.load %arg4[%c0_11, %c0_12] : memref<1x64xf32, #tpu.memory_space<vmem>>, vector<1x64xf32>
      %31 = vector.broadcast %30 : vector<1x64xf32> to vector<32x64xf32>
      %32 = arith.addf %29, %31 : vector<32x64xf32>
      %33 = arith.index_cast %1 : i32 to index
      %c0_13 = arith.constant 0 : index
      %34 = vector.load %arg18[%33, %c0_13] : memref<64x64xf32, #tpu.memory_space<vmem>>, vector<32x64xf32>
      tpu.vector_store %arg18[%33, %c0_13], %32 {strides = array<i32>} : memref<64x64xf32, #tpu.memory_space<vmem>>, vector<32x64xf32>,
      %35 = vector.broadcast %9 : vector<32x1xf32> to vector<32x64xf32>
      %36 = arith.mulf %32, %35 : vector<32x64xf32>
      %c0_14 = arith.constant 0 : index
      %c0_15 = arith.constant 0 : index
      %37 = vector.load %arg21[%c0_14, %c0_15] : memref<1x64xf32, #tpu.memory_space<vmem>>, vector<1x64xf32>
      %cst_16 = arith.constant dense<0.000000e+00> : vector<64xf32>
      %38 = vector.multi_reduction <add>, %36, %cst_16 [0] : vector<32x64xf32> to vector<64xf32>
      %39 = vector.shape_cast %38 : vector<64xf32> to vector<1x64xf32>
      %40 = arith.addf %37, %39 : vector<1x64xf32>
      %c0_17 = arith.constant 0 : index
      %c0_18 = arith.constant 0 : index
      %41 = vector.load %arg21[%c0_17, %c0_18] : memref<1x64xf32, #tpu.memory_space<vmem>>, vector<1x64xf32>
      tpu.vector_store %arg21[%c0_17, %c0_18], %40 {strides = array<i32>} : memref<1x64xf32, #tpu.memory_space<vmem>>, vector<1x64xf32>,
      %c0_19 = arith.constant 0 : index
      %c0_20 = arith.constant 0 : index
      %42 = vector.load %arg22[%c0_19, %c0_20] : memref<1x64xf32, #tpu.memory_space<vmem>>, vector<1x64xf32>
      %43 = arith.mulf %36, %36 : vector<32x64xf32>
      %cst_21 = arith.constant dense<0.000000e+00> : vector<64xf32>
      %44 = vector.multi_reduction <add>, %43, %cst_21 [0] : vector<32x64xf32> to vector<64xf32>
      %45 = vector.shape_cast %44 : vector<64xf32> to vector<1x64xf32>
      %46 = arith.addf %42, %45 : vector<1x64xf32>
      %c0_22 = arith.constant 0 : index
      %c0_23 = arith.constant 0 : index
      %47 = vector.load %arg22[%c0_22, %c0_23] : memref<1x64xf32, #tpu.memory_space<vmem>>, vector<1x64xf32>
      tpu.vector_store %arg22[%c0_22, %c0_23], %46 {strides = array<i32>} : memref<1x64xf32, #tpu.memory_space<vmem>>, vector<1x64xf32>,
    } else {
    }
    %c1_i32 = arith.constant 1 : i32
    %18 = arith.cmpi eq, %arg0, %c1_i32 : i32
    %19 = arith.extui %18 : i1 to i32
    %c0_i32_5 = arith.constant 0 : i32
    %20 = arith.cmpi ne, %19, %c0_i32_5 : i32
    scf.if %20 {
      %27 = arith.index_cast %1 : i32 to index
      %c0 = arith.constant 0 : index
      %28 = vector.load %arg18[%27, %c0] : memref<64x64xf32, #tpu.memory_space<vmem>>, vector<32x64xf32>
      %c0_8 = arith.constant 0 : index
      %c0_9 = arith.constant 0 : index
      %29 = vector.load %arg21[%c0_8, %c0_9] : memref<1x64xf32, #tpu.memory_space<vmem>>, vector<1x64xf32>
      %cst = arith.constant 2.000000e-02 : f32
      %30 = vector.broadcast %cst : f32 to vector<1x64xf32>
      %31 = arith.mulf %29, %30 : vector<1x64xf32>
      %c0_10 = arith.constant 0 : index
      %c0_11 = arith.constant 0 : index
      %32 = vector.load %arg22[%c0_10, %c0_11] : memref<1x64xf32, #tpu.memory_space<vmem>>, vector<1x64xf32>
      %cst_12 = arith.constant 2.000000e-02 : f32
      %33 = vector.broadcast %cst_12 : f32 to vector<1x64xf32>
      %34 = arith.mulf %32, %33 : vector<1x64xf32>
      %35 = arith.mulf %31, %31 : vector<1x64xf32>
      %36 = arith.subf %34, %35 : vector<1x64xf32>
      %37 = vector.broadcast %31 : vector<1x64xf32> to vector<32x64xf32>
      %38 = arith.subf %28, %37 : vector<32x64xf32>
      %cst_13 = arith.constant 9.99999974E-6 : f32
      %39 = vector.broadcast %cst_13 : f32 to vector<1x64xf32>
      %40 = arith.addf %36, %39 : vector<1x64xf32>
      %41 = math.rsqrt %40 : vector<1x64xf32>
      %42 = vector.broadcast %41 : vector<1x64xf32> to vector<32x64xf32>
      %43 = arith.mulf %38, %42 : vector<32x64xf32>
      %c0_14 = arith.constant 0 : index
      %c0_15 = arith.constant 0 : index
      %44 = vector.load %arg5[%c0_14, %c0_15] : memref<1x64xf32, #tpu.memory_space<vmem>>, vector<1x64xf32>
      %45 = vector.broadcast %44 : vector<1x64xf32> to vector<32x64xf32>
      %46 = arith.mulf %43, %45 : vector<32x64xf32>
      %c0_16 = arith.constant 0 : index
      %c0_17 = arith.constant 0 : index
      %47 = vector.load %arg6[%c0_16, %c0_17] : memref<1x64xf32, #tpu.memory_space<vmem>>, vector<1x64xf32>
      %48 = vector.broadcast %47 : vector<1x64xf32> to vector<32x64xf32>
      %49 = arith.addf %46, %48 : vector<32x64xf32>
      %cst_18 = arith.constant 0.000000e+00 : f32
      %50 = vector.broadcast %cst_18 : f32 to vector<32x64xf32>
      %51 = arith.maximumf %49, %50 : vector<32x64xf32>
      %c0_19 = arith.constant 0 : index
      %c0_20 = arith.constant 0 : index
      %52 = vector.load %arg7[%c0_19, %c0_20] : memref<64x256xf32, #tpu.memory_space<vmem>>, vector<64x256xf32>
      %cst_21 = arith.constant dense<0.000000e+00> : vector<32x256xf32>
      %53 = tpu.matmul %51, %52, %cst_21 {dimension_numbers = #tpu.dot_dimension_numbers<[1], [0], [0], [1], [0, 0, 1, 1], [], []>} : vector<32x64xf32>, vector<64x256xf32>, vector<32x256xf32> -> vector<32x256xf32>
      %c0_22 = arith.constant 0 : index
      %c0_23 = arith.constant 0 : index
      %54 = vector.load %arg8[%c0_22, %c0_23] : memref<1x256xf32, #tpu.memory_space<vmem>>, vector<1x256xf32>
      %55 = vector.broadcast %54 : vector<1x256xf32> to vector<32x256xf32>
      %56 = arith.addf %53, %55 : vector<32x256xf32>
      %57 = arith.index_cast %1 : i32 to index
      %c0_24 = arith.constant 0 : index
      %58 = vector.load %arg19[%57, %c0_24] : memref<64x256xf32, #tpu.memory_space<vmem>>, vector<32x256xf32>
      tpu.vector_store %arg19[%57, %c0_24], %56 {strides = array<i32>} : memref<64x256xf32, #tpu.memory_space<vmem>>, vector<32x256xf32>,
      %59 = vector.broadcast %9 : vector<32x1xf32> to vector<32x256xf32>
      %60 = arith.mulf %56, %59 : vector<32x256xf32>
      %c0_25 = arith.constant 0 : index
      %c0_26 = arith.constant 0 : index
      %61 = vector.load %arg23[%c0_25, %c0_26] : memref<1x256xf32, #tpu.memory_space<vmem>>, vector<1x256xf32>
      %cst_27 = arith.constant dense<0.000000e+00> : vector<256xf32>
      %62 = vector.multi_reduction <add>, %60, %cst_27 [0] : vector<32x256xf32> to vector<256xf32>
      %63 = vector.shape_cast %62 : vector<256xf32> to vector<1x256xf32>
      %64 = arith.addf %61, %63 : vector<1x256xf32>
      %c0_28 = arith.constant 0 : index
      %c0_29 = arith.constant 0 : index
      %65 = vector.load %arg23[%c0_28, %c0_29] : memref<1x256xf32, #tpu.memory_space<vmem>>, vector<1x256xf32>
      tpu.vector_store %arg23[%c0_28, %c0_29], %64 {strides = array<i32>} : memref<1x256xf32, #tpu.memory_space<vmem>>, vector<1x256xf32>,
      %c0_30 = arith.constant 0 : index
      %c0_31 = arith.constant 0 : index
      %66 = vector.load %arg24[%c0_30, %c0_31] : memref<1x256xf32, #tpu.memory_space<vmem>>, vector<1x256xf32>
      %67 = arith.mulf %60, %60 : vector<32x256xf32>
      %cst_32 = arith.constant dense<0.000000e+00> : vector<256xf32>
      %68 = vector.multi_reduction <add>, %67, %cst_32 [0] : vector<32x256xf32> to vector<256xf32>
      %69 = vector.shape_cast %68 : vector<256xf32> to vector<1x256xf32>
      %70 = arith.addf %66, %69 : vector<1x256xf32>
      %c0_33 = arith.constant 0 : index
      %c0_34 = arith.constant 0 : index
      %71 = vector.load %arg24[%c0_33, %c0_34] : memref<1x256xf32, #tpu.memory_space<vmem>>, vector<1x256xf32>
      tpu.vector_store %arg24[%c0_33, %c0_34], %70 {strides = array<i32>} : memref<1x256xf32, #tpu.memory_space<vmem>>, vector<1x256xf32>,
    } else {
    }
    %c2_i32 = arith.constant 2 : i32
    %21 = arith.cmpi eq, %arg0, %c2_i32 : i32
    %22 = arith.extui %21 : i1 to i32
    %c0_i32_6 = arith.constant 0 : i32
    %23 = arith.cmpi ne, %22, %c0_i32_6 : i32
    scf.if %23 {
      %27 = arith.index_cast %1 : i32 to index
      %c0 = arith.constant 0 : index
      %28 = vector.load %arg19[%27, %c0] : memref<64x256xf32, #tpu.memory_space<vmem>>, vector<32x256xf32>
      %c0_8 = arith.constant 0 : index
      %c0_9 = arith.constant 0 : index
      %29 = vector.load %arg23[%c0_8, %c0_9] : memref<1x256xf32, #tpu.memory_space<vmem>>, vector<1x256xf32>
      %cst = arith.constant 2.000000e-02 : f32
      %30 = vector.broadcast %cst : f32 to vector<1x256xf32>
      %31 = arith.mulf %29, %30 : vector<1x256xf32>
      %c0_10 = arith.constant 0 : index
      %c0_11 = arith.constant 0 : index
      %32 = vector.load %arg24[%c0_10, %c0_11] : memref<1x256xf32, #tpu.memory_space<vmem>>, vector<1x256xf32>
      %cst_12 = arith.constant 2.000000e-02 : f32
      %33 = vector.broadcast %cst_12 : f32 to vector<1x256xf32>
      %34 = arith.mulf %32, %33 : vector<1x256xf32>
      %35 = arith.mulf %31, %31 : vector<1x256xf32>
      %36 = arith.subf %34, %35 : vector<1x256xf32>
      %37 = vector.broadcast %31 : vector<1x256xf32> to vector<32x256xf32>
      %38 = arith.subf %28, %37 : vector<32x256xf32>
      %cst_13 = arith.constant 9.99999974E-6 : f32
      %39 = vector.broadcast %cst_13 : f32 to vector<1x256xf32>
      %40 = arith.addf %36, %39 : vector<1x256xf32>
      %41 = math.rsqrt %40 : vector<1x256xf32>
      %42 = vector.broadcast %41 : vector<1x256xf32> to vector<32x256xf32>
      %43 = arith.mulf %38, %42 : vector<32x256xf32>
      %c0_14 = arith.constant 0 : index
      %c0_15 = arith.constant 0 : index
      %44 = vector.load %arg9[%c0_14, %c0_15] : memref<1x256xf32, #tpu.memory_space<vmem>>, vector<1x256xf32>
      %45 = vector.broadcast %44 : vector<1x256xf32> to vector<32x256xf32>
      %46 = arith.mulf %43, %45 : vector<32x256xf32>
      %c0_16 = arith.constant 0 : index
      %c0_17 = arith.constant 0 : index
      %47 = vector.load %arg10[%c0_16, %c0_17] : memref<1x256xf32, #tpu.memory_space<vmem>>, vector<1x256xf32>
      %48 = vector.broadcast %47 : vector<1x256xf32> to vector<32x256xf32>
      %49 = arith.addf %46, %48 : vector<32x256xf32>
      %cst_18 = arith.constant 0.000000e+00 : f32
      %50 = vector.broadcast %cst_18 : f32 to vector<32x256xf32>
      %51 = arith.maximumf %49, %50 : vector<32x256xf32>
      %c0_19 = arith.constant 0 : index
      %c0_20 = arith.constant 0 : index
      %52 = vector.load %arg11[%c0_19, %c0_20] : memref<256x512xf32, #tpu.memory_space<vmem>>, vector<256x512xf32>
      %cst_21 = arith.constant dense<0.000000e+00> : vector<32x512xf32>
      %53 = tpu.matmul %51, %52, %cst_21 {dimension_numbers = #tpu.dot_dimension_numbers<[1], [0], [0], [1], [0, 0, 1, 1], [], []>} : vector<32x256xf32>, vector<256x512xf32>, vector<32x512xf32> -> vector<32x512xf32>
      %c0_22 = arith.constant 0 : index
      %c0_23 = arith.constant 0 : index
      %54 = vector.load %arg12[%c0_22, %c0_23] : memref<1x512xf32, #tpu.memory_space<vmem>>, vector<1x512xf32>
      %55 = vector.broadcast %54 : vector<1x512xf32> to vector<32x512xf32>
      %56 = arith.addf %53, %55 : vector<32x512xf32>
      %57 = arith.index_cast %1 : i32 to index
      %c0_24 = arith.constant 0 : index
      %58 = vector.load %arg20[%57, %c0_24] : memref<64x512xf32, #tpu.memory_space<vmem>>, vector<32x512xf32>
      tpu.vector_store %arg20[%57, %c0_24], %56 {strides = array<i32>} : memref<64x512xf32, #tpu.memory_space<vmem>>, vector<32x512xf32>,
      %59 = vector.broadcast %9 : vector<32x1xf32> to vector<32x512xf32>
      %60 = arith.mulf %56, %59 : vector<32x512xf32>
      %c0_25 = arith.constant 0 : index
      %c0_26 = arith.constant 0 : index
      %61 = vector.load %arg25[%c0_25, %c0_26] : memref<1x512xf32, #tpu.memory_space<vmem>>, vector<1x512xf32>
      %cst_27 = arith.constant dense<0.000000e+00> : vector<512xf32>
      %62 = vector.multi_reduction <add>, %60, %cst_27 [0] : vector<32x512xf32> to vector<512xf32>
      %63 = vector.shape_cast %62 : vector<512xf32> to vector<1x512xf32>
      %64 = arith.addf %61, %63 : vector<1x512xf32>
      %c0_28 = arith.constant 0 : index
      %c0_29 = arith.constant 0 : index
      %65 = vector.load %arg25[%c0_28, %c0_29] : memref<1x512xf32, #tpu.memory_space<vmem>>, vector<1x512xf32>
      tpu.vector_store %arg25[%c0_28, %c0_29], %64 {strides = array<i32>} : memref<1x512xf32, #tpu.memory_space<vmem>>, vector<1x512xf32>,
      %c0_30 = arith.constant 0 : index
      %c0_31 = arith.constant 0 : index
      %66 = vector.load %arg26[%c0_30, %c0_31] : memref<1x512xf32, #tpu.memory_space<vmem>>, vector<1x512xf32>
      %67 = arith.mulf %60, %60 : vector<32x512xf32>
      %cst_32 = arith.constant dense<0.000000e+00> : vector<512xf32>
      %68 = vector.multi_reduction <add>, %67, %cst_32 [0] : vector<32x512xf32> to vector<512xf32>
      %69 = vector.shape_cast %68 : vector<512xf32> to vector<1x512xf32>
      %70 = arith.addf %66, %69 : vector<1x512xf32>
      %c0_33 = arith.constant 0 : index
      %c0_34 = arith.constant 0 : index
      %71 = vector.load %arg26[%c0_33, %c0_34] : memref<1x512xf32, #tpu.memory_space<vmem>>, vector<1x512xf32>
      tpu.vector_store %arg26[%c0_33, %c0_34], %70 {strides = array<i32>} : memref<1x512xf32, #tpu.memory_space<vmem>>, vector<1x512xf32>,
    } else {
    }
    %c3_i32 = arith.constant 3 : i32
    %24 = arith.cmpi eq, %arg0, %c3_i32 : i32
    %25 = arith.extui %24 : i1 to i32
    %c0_i32_7 = arith.constant 0 : i32
    %26 = arith.cmpi ne, %25, %c0_i32_7 : i32
    scf.if %26 {
      %27 = arith.index_cast %1 : i32 to index
      %c0 = arith.constant 0 : index
      %28 = vector.load %arg20[%27, %c0] : memref<64x512xf32, #tpu.memory_space<vmem>>, vector<32x512xf32>
      %c0_8 = arith.constant 0 : index
      %c0_9 = arith.constant 0 : index
      %29 = vector.load %arg25[%c0_8, %c0_9] : memref<1x512xf32, #tpu.memory_space<vmem>>, vector<1x512xf32>
      %cst = arith.constant 2.000000e-02 : f32
      %30 = vector.broadcast %cst : f32 to vector<1x512xf32>
      %31 = arith.mulf %29, %30 : vector<1x512xf32>
      %c0_10 = arith.constant 0 : index
      %c0_11 = arith.constant 0 : index
      %32 = vector.load %arg26[%c0_10, %c0_11] : memref<1x512xf32, #tpu.memory_space<vmem>>, vector<1x512xf32>
      %cst_12 = arith.constant 2.000000e-02 : f32
      %33 = vector.broadcast %cst_12 : f32 to vector<1x512xf32>
      %34 = arith.mulf %32, %33 : vector<1x512xf32>
      %35 = arith.mulf %31, %31 : vector<1x512xf32>
      %36 = arith.subf %34, %35 : vector<1x512xf32>
      %37 = vector.broadcast %31 : vector<1x512xf32> to vector<32x512xf32>
      %38 = arith.subf %28, %37 : vector<32x512xf32>
      %cst_13 = arith.constant 9.99999974E-6 : f32
      %39 = vector.broadcast %cst_13 : f32 to vector<1x512xf32>
      %40 = arith.addf %36, %39 : vector<1x512xf32>
      %41 = math.rsqrt %40 : vector<1x512xf32>
      %42 = vector.broadcast %41 : vector<1x512xf32> to vector<32x512xf32>
      %43 = arith.mulf %38, %42 : vector<32x512xf32>
      %c0_14 = arith.constant 0 : index
      %c0_15 = arith.constant 0 : index
      %44 = vector.load %arg13[%c0_14, %c0_15] : memref<1x512xf32, #tpu.memory_space<vmem>>, vector<1x512xf32>
      %45 = vector.broadcast %44 : vector<1x512xf32> to vector<32x512xf32>
      %46 = arith.mulf %43, %45 : vector<32x512xf32>
      %c0_16 = arith.constant 0 : index
      %c0_17 = arith.constant 0 : index
      %47 = vector.load %arg14[%c0_16, %c0_17] : memref<1x512xf32, #tpu.memory_space<vmem>>, vector<1x512xf32>
      %48 = vector.broadcast %47 : vector<1x512xf32> to vector<32x512xf32>
      %49 = arith.addf %46, %48 : vector<32x512xf32>
      %cst_18 = arith.constant 0.000000e+00 : f32
      %50 = vector.broadcast %cst_18 : f32 to vector<32x512xf32>
      %51 = arith.maximumf %49, %50 : vector<32x512xf32>
      %c0_19 = arith.constant 0 : index
      %c0_20 = arith.constant 0 : index
      %52 = vector.load %arg15[%c0_19, %c0_20] : memref<512x128xf32, #tpu.memory_space<vmem>>, vector<512x128xf32>
      %cst_21 = arith.constant dense<0.000000e+00> : vector<32x128xf32>
      %53 = tpu.matmul %51, %52, %cst_21 {dimension_numbers = #tpu.dot_dimension_numbers<[1], [0], [0], [1], [0, 0, 1, 1], [], []>} : vector<32x512xf32>, vector<512x128xf32>, vector<32x128xf32> -> vector<32x128xf32>
      %c0_22 = arith.constant 0 : index
      %c0_23 = arith.constant 0 : index
      %54 = vector.load %arg16[%c0_22, %c0_23] : memref<1x128xf32, #tpu.memory_space<vmem>>, vector<1x128xf32>
      %55 = vector.broadcast %54 : vector<1x128xf32> to vector<32x128xf32>
      %56 = arith.addf %53, %55 : vector<32x128xf32>
      %c0_24 = arith.constant 0 : index
      %c0_25 = arith.constant 0 : index
      %57 = vector.load %arg17[%c0_24, %c0_25] : memref<32x128xf32, #tpu.memory_space<vmem>>, vector<32x128xf32>
      tpu.vector_store %arg17[%c0_24, %c0_25], %56 {strides = array<i32>} : memref<32x128xf32, #tpu.memory_space<vmem>>, vector<32x128xf32>,
    } else {
    }
    return
  }
  func.func @transform_0(%arg0: i32, %arg1: i32) -> (i32, i32) {
    %c0_i32 = arith.constant 0 : i32
    %c0_i32_0 = arith.constant 0 : i32
    return %arg1, %c0_i32 : i32, i32
  }
  func.func @transform_1(%arg0: i32, %arg1: i32) -> (i32, i32) {
    %c0_i32 = arith.constant 0 : i32
    %c0_i32_0 = arith.constant 0 : i32
    %c0_i32_1 = arith.constant 0 : i32
    return %c0_i32, %c0_i32_0 : i32, i32
  }
  func.func @transform_2(%arg0: i32, %arg1: i32) -> (i32, i32) {
    %c0_i32 = arith.constant 0 : i32
    %c0_i32_0 = arith.constant 0 : i32
    %c0_i32_1 = arith.constant 0 : i32
    return %c0_i32, %c0_i32_0 : i32, i32
  }
  func.func @transform_3(%arg0: i32, %arg1: i32) -> (i32, i32) {
    %c0_i32 = arith.constant 0 : i32
    %c0_i32_0 = arith.constant 0 : i32
    %c0_i32_1 = arith.constant 0 : i32
    return %c0_i32, %c0_i32_0 : i32, i32
  }
  func.func @transform_4(%arg0: i32, %arg1: i32) -> (i32, i32) {
    %c0_i32 = arith.constant 0 : i32
    %c0_i32_0 = arith.constant 0 : i32
    %c0_i32_1 = arith.constant 0 : i32
    return %c0_i32, %c0_i32_0 : i32, i32
  }
  func.func @transform_5(%arg0: i32, %arg1: i32) -> (i32, i32) {
    %c0_i32 = arith.constant 0 : i32
    %c0_i32_0 = arith.constant 0 : i32
    %c0_i32_1 = arith.constant 0 : i32
    return %c0_i32, %c0_i32_0 : i32, i32
  }
  func.func @transform_6(%arg0: i32, %arg1: i32) -> (i32, i32) {
    %c0_i32 = arith.constant 0 : i32
    %c0_i32_0 = arith.constant 0 : i32
    %c0_i32_1 = arith.constant 0 : i32
    return %c0_i32, %c0_i32_0 : i32, i32
  }
  func.func @transform_7(%arg0: i32, %arg1: i32) -> (i32, i32) {
    %c0_i32 = arith.constant 0 : i32
    %c0_i32_0 = arith.constant 0 : i32
    %c0_i32_1 = arith.constant 0 : i32
    return %c0_i32, %c0_i32_0 : i32, i32
  }
  func.func @transform_8(%arg0: i32, %arg1: i32) -> (i32, i32) {
    %c0_i32 = arith.constant 0 : i32
    %c0_i32_0 = arith.constant 0 : i32
    %c0_i32_1 = arith.constant 0 : i32
    return %c0_i32, %c0_i32_0 : i32, i32
  }
  func.func @transform_9(%arg0: i32, %arg1: i32) -> (i32, i32) {
    %c0_i32 = arith.constant 0 : i32
    %c0_i32_0 = arith.constant 0 : i32
    %c0_i32_1 = arith.constant 0 : i32
    return %c0_i32, %c0_i32_0 : i32, i32
  }
  func.func @transform_10(%arg0: i32, %arg1: i32) -> (i32, i32) {
    %c0_i32 = arith.constant 0 : i32
    %c0_i32_0 = arith.constant 0 : i32
    %c0_i32_1 = arith.constant 0 : i32
    return %c0_i32, %c0_i32_0 : i32, i32
  }
  func.func @transform_11(%arg0: i32, %arg1: i32) -> (i32, i32) {
    %c0_i32 = arith.constant 0 : i32
    %c0_i32_0 = arith.constant 0 : i32
    %c0_i32_1 = arith.constant 0 : i32
    return %c0_i32, %c0_i32_0 : i32, i32
  }
  func.func @transform_12(%arg0: i32, %arg1: i32) -> (i32, i32) {
    %c0_i32 = arith.constant 0 : i32
    %c0_i32_0 = arith.constant 0 : i32
    %c0_i32_1 = arith.constant 0 : i32
    return %c0_i32, %c0_i32_0 : i32, i32
  }
  func.func @transform_13(%arg0: i32, %arg1: i32) -> (i32, i32) {
    %c0_i32 = arith.constant 0 : i32
    %c0_i32_0 = arith.constant 0 : i32
    %c0_i32_1 = arith.constant 0 : i32
    return %c0_i32, %c0_i32_0 : i32, i32
  }
  func.func @transform_14(%arg0: i32, %arg1: i32) -> (i32, i32) {
    %c0_i32 = arith.constant 0 : i32
    %c0_i32_0 = arith.constant 0 : i32
    %c0_i32_1 = arith.constant 0 : i32
    return %c0_i32, %c0_i32_0 : i32, i32
  }
  func.func @transform_15(%arg0: i32, %arg1: i32) -> (i32, i32) {
    %c0_i32 = arith.constant 0 : i32
    %c0_i32_0 = arith.constant 0 : i32
    return %arg1, %c0_i32 : i32, i32
  }
}

</mosaic_0001>

<llo_original>
// kernel: nn_regression_forward.1
$region0: #{nn_regression_forward.1}
  #allocation0 [shape = 'u32[]', space=smem, size = 0x4, offset = 0x4, fixed_abs, tag = 'smem constant byte address 0x4 - core index']
  #allocation1 [shape = 'u32[144,128]{1,0:T(1,128)}', space=vmem, size = 0x12000, scoped, tag = 'internal scratch']
  #allocation2 [shape = 'f32[64,64]{1,0:T(8,128)}', space=vmem, size = 0x8000, scoped, tag = 'scratch operand']
  #allocation3 [shape = 'f32[64,256]{1,0:T(8,128)}', space=vmem, size = 0x10000, scoped, tag = 'scratch operand']
  #allocation4 [shape = 'f32[64,512]{1,0:T(8,128)}', space=vmem, size = 0x20000, scoped, tag = 'scratch operand']
  #allocation5 [shape = 'f32[1,64]{1,0:T(1,128)}', space=vmem, size = 0x200, scoped, tag = 'scratch operand']
  #allocation6 [shape = 'f32[1,64]{1,0:T(1,128)}', space=vmem, size = 0x200, scoped, tag = 'scratch operand']
  #allocation7 [shape = 'f32[1,256]{1,0:T(1,128)}', space=vmem, size = 0x400, scoped, tag = 'scratch operand']
  #allocation8 [shape = 'f32[1,256]{1,0:T(1,128)}', space=vmem, size = 0x400, scoped, tag = 'scratch operand']
  #allocation9 [shape = 'f32[1,512]{1,0:T(1,128)}', space=vmem, size = 0x800, scoped, tag = 'scratch operand']
  #allocation10 [shape = 'f32[1,512]{1,0:T(1,128)}', space=vmem, size = 0x800, scoped, tag = 'scratch operand']
  %s0 = inlined_call_operand.vmem [shape: f32[64,16], index: 0, kind: input, shape index: {}]
  %s1 = inlined_call_operand.vmem [shape: f32[16,64], index: 1, kind: input, shape index: {}]
  %s2 = inlined_call_operand.vmem [shape: f32[1,64], index: 2, kind: input, shape index: {}]
  %s3 = inlined_call_operand.vmem [shape: f32[1,64], index: 3, kind: input, shape index: {}]
  %s4 = inlined_call_operand.vmem [shape: f32[1,64], index: 4, kind: input, shape index: {}]
  %s5 = inlined_call_operand.vmem [shape: f32[64,256], index: 5, kind: input, shape index: {}]
  %s6 = inlined_call_operand.vmem [shape: f32[1,256], index: 6, kind: input, shape index: {}]
  %s7 = inlined_call_operand.vmem [shape: f32[1,256], index: 7, kind: input, shape index: {}]
  %s8 = inlined_call_operand.vmem [shape: f32[1,256], index: 8, kind: input, shape index: {}]
  %s9 = inlined_call_operand.vmem [shape: f32[256,512], index: 9, kind: input, shape index: {}]
  %s10 = inlined_call_operand.vmem [shape: f32[1,512], index: 10, kind: input, shape index: {}]
  %s11 = inlined_call_operand.vmem [shape: f32[1,512], index: 11, kind: input, shape index: {}]
  %s12 = inlined_call_operand.vmem [shape: f32[1,512], index: 12, kind: input, shape index: {}]
  %s13 = inlined_call_operand.vmem [shape: f32[512,128], index: 13, kind: input, shape index: {}]
  %s14 = inlined_call_operand.vmem [shape: f32[1,128], index: 14, kind: input, shape index: {}]
  %s15 = inlined_call_operand.vmem [shape: f32[64,128], index: 15, kind: output, shape index: {}]
  %s16 = sld [smem:[#allocation0]]
  $region113: #{nn_regression_forward.1} parent=0
    _
  %s18 = ssub.s32 1, %s16
  %s19 = scalar_select 0, %s18, %s16
  loop: start=0, step=1, limit=10
  $region2: #{nn_regression_forward.1} parent=0 // loop_pre_header
    _
  $region3: #{nn_regression_forward.1} parent=0 // loop_header
    %s21 = sphi 0, %s25
    %p22 = scmp.ge.s32.totalorder %s21, 10
    %s28 = sphi 0, %s40
    %s29 = sphi 0, %s36
    %s30 = sphi 0, %s28
    %s31 = sphi 0, %s29
    %s32 = sphi 0, %s30
    %s33 = sphi 0, %s31
    %s43 = sphi 0, %s45
    %s46 = sphi 0, %s43
    %s47 = sphi 0, %s46
    %s63 = sphi 0, %s47
    %s67 = sphi 0, %s67
    %s69 = sphi 0, %s67
    %s70 = sphi 0, %s69
    %s84 = sphi 0, %s70
    %s88 = sphi 0, %s88
    %s90 = sphi 0, %s88
    %s91 = sphi 0, %s90
    %s105 = sphi 0, %s91
    %s109 = sphi 0, %s109
    %s111 = sphi 0, %s109
    %s112 = sphi 0, %s111
    %s126 = sphi 0, %s112
    %s130 = sphi 0, %s130
    %s132 = sphi 0, %s130
    %s133 = sphi 0, %s132
    %s147 = sphi 0, %s133
    %s151 = sphi 0, %s151
    %s153 = sphi 0, %s151
    %s154 = sphi 0, %s153
    %s168 = sphi 0, %s154
    %s172 = sphi 0, %s172
    %s174 = sphi 0, %s172
    %s175 = sphi 0, %s174
    %s189 = sphi 0, %s175
    %s193 = sphi 0, %s193
    %s195 = sphi 0, %s193
    %s196 = sphi 0, %s195
    %s210 = sphi 0, %s196
    %s214 = sphi 0, %s214
    %s216 = sphi 0, %s214
    %s217 = sphi 0, %s216
    %s231 = sphi 0, %s217
    %s235 = sphi 0, %s235
    %s237 = sphi 0, %s235
    %s238 = sphi 0, %s237
    %s252 = sphi 0, %s238
    %s256 = sphi 0, %s256
    %s258 = sphi 0, %s256
    %s259 = sphi 0, %s258
    %s273 = sphi 0, %s259
    %s277 = sphi 0, %s277
    %s279 = sphi 0, %s277
    %s280 = sphi 0, %s279
    %s294 = sphi 0, %s280
    %s298 = sphi 0, %s298
    %s300 = sphi 0, %s298
    %s301 = sphi 0, %s300
    %s315 = sphi 0, %s301
    %s319 = sphi 0, %s319
    %s321 = sphi 0, %s319
    %s322 = sphi 0, %s321
    %s336 = sphi 0, %s322
    %s340 = sphi 0, %s340
    %s342 = sphi 0, %s340
    %s343 = sphi 0, %s342
    %s357 = sphi 0, %s343
    %s363 = sphi 0, %s365
    %s366 = sphi 0, %s363
    %s367 = sphi 0, %s366
    %s383 = sphi 0, %s367
  $region4: #{nn_regression_forward.1} parent=0 // loop_header_branch
    %24 = sbr.rel (%p22) target = $region8
  $region5: #{nn_regression_forward.1} parent=0 // loop_body
    %s26 = ssub.s32 %s21, 1
    %s27 = ssub.s32 %s21, 2
    %s34 = sadd.s32 1, %s29
    %p35 = scmp.ge.s32.totalorder %s34, 2
    %s36 = scalar_select %p35, 0, %s34
    %s37 = sadd.s32 1, %s28
    %s38 = scalar_select %p35, %s37, %s28
    %p39 = scmp.ge.s32.totalorder %s38, 4
    %s40 = scalar_select %p39, 0, %s38
    %s41 = ssub.s32 %s29, %s36
    %p42 = scmp.eq.s32.totalorder %s41, 0
    %s44 = sadd.s32 %s43, 1
    %s45 = scalar_select %p42, %s43, %s44
    %p48 = pneg %p42
    %p49 = scmp.eq.s32.totalorder %s21, 7
    %p50 = por %p48, %p49
    %p51 = scmp.ne.s32.totalorder %s43, %s46
    %p52 = scmp.eq.s32.totalorder %s21, 0
    %p53 = por %p51, %p52
    %p54 = scmp.ne.s32.totalorder %s43, %s46
    %p55 = scmp.eq.s32.totalorder %s26, 7
    %p56 = por %p54, %p55
    %p57 = scmp.ne.s32.totalorder %s46, %s47
    %p58 = scmp.eq.s32.totalorder %s26, 0
    %p59 = por %p57, %p58
    %p60 = scmp.ne.s32.totalorder %s46, %s47
    %p61 = scmp.eq.s32.totalorder %s27, 7
    %p62 = por %p60, %p61
    %p64 = scmp.ne.s32.totalorder %s47, %s63
    %p65 = scmp.eq.s32.totalorder %s27, 0
    %p66 = por %p64, %p65
    %s68 = sadd.s32 %s67, 1
    %p71 = scmp.eq.s32.totalorder %s21, 7
    %p72 = scmp.ne.s32.totalorder %s67, %s69
    %p73 = scmp.eq.s32.totalorder %s21, 0
    %p74 = por %p72, %p73
    %p75 = scmp.ne.s32.totalorder %s67, %s69
    %p76 = scmp.eq.s32.totalorder %s26, 7
    %p77 = por %p75, %p76
    %p78 = scmp.ne.s32.totalorder %s69, %s70
    %p79 = scmp.eq.s32.totalorder %s26, 0
    %p80 = por %p78, %p79
    %p81 = scmp.ne.s32.totalorder %s69, %s70
    %p82 = scmp.eq.s32.totalorder %s27, 7
    %p83 = por %p81, %p82
    %p85 = scmp.ne.s32.totalorder %s70, %s84
    %p86 = scmp.eq.s32.totalorder %s27, 0
    %p87 = por %p85, %p86
    %s89 = sadd.s32 %s88, 1
    %p92 = scmp.eq.s32.totalorder %s21, 7
    %p93 = scmp.ne.s32.totalorder %s88, %s90
    %p94 = scmp.eq.s32.totalorder %s21, 0
    %p95 = por %p93, %p94
    %p96 = scmp.ne.s32.totalorder %s88, %s90
    %p97 = scmp.eq.s32.totalorder %s26, 7
    %p98 = por %p96, %p97
    %p99 = scmp.ne.s32.totalorder %s90, %s91
    %p100 = scmp.eq.s32.totalorder %s26, 0
    %p101 = por %p99, %p100
    %p102 = scmp.ne.s32.totalorder %s90, %s91
    %p103 = scmp.eq.s32.totalorder %s27, 7
    %p104 = por %p102, %p103
    %p106 = scmp.ne.s32.totalorder %s91, %s105
    %p107 = scmp.eq.s32.totalorder %s27, 0
    %p108 = por %p106, %p107
    %s110 = sadd.s32 %s109, 1
    %p113 = scmp.eq.s32.totalorder %s21, 7
    %p114 = scmp.ne.s32.totalorder %s109, %s111
    %p115 = scmp.eq.s32.totalorder %s21, 0
    %p116 = por %p114, %p115
    %p117 = scmp.ne.s32.totalorder %s109, %s111
    %p118 = scmp.eq.s32.totalorder %s26, 7
    %p119 = por %p117, %p118
    %p120 = scmp.ne.s32.totalorder %s111, %s112
    %p121 = scmp.eq.s32.totalorder %s26, 0
    %p122 = por %p120, %p121
    %p123 = scmp.ne.s32.totalorder %s111, %s112
    %p124 = scmp.eq.s32.totalorder %s27, 7
    %p125 = por %p123, %p124
    %p127 = scmp.ne.s32.totalorder %s112, %s126
    %p128 = scmp.eq.s32.totalorder %s27, 0
    %p129 = por %p127, %p128
    %s131 = sadd.s32 %s130, 1
    %p134 = scmp.eq.s32.totalorder %s21, 7
    %p135 = scmp.ne.s32.totalorder %s130, %s132
    %p136 = scmp.eq.s32.totalorder %s21, 0
    %p137 = por %p135, %p136
    %p138 = scmp.ne.s32.totalorder %s130, %s132
    %p139 = scmp.eq.s32.totalorder %s26, 7
    %p140 = por %p138, %p139
    %p141 = scmp.ne.s32.totalorder %s132, %s133
    %p142 = scmp.eq.s32.totalorder %s26, 0
    %p143 = por %p141, %p142
    %p144 = scmp.ne.s32.totalorder %s132, %s133
    %p145 = scmp.eq.s32.totalorder %s27, 7
    %p146 = por %p144, %p145
    %p148 = scmp.ne.s32.totalorder %s133, %s147
    %p149 = scmp.eq.s32.totalorder %s27, 0
    %p150 = por %p148, %p149
    %s152 = sadd.s32 %s151, 1
    %p155 = scmp.eq.s32.totalorder %s21, 7
    %p156 = scmp.ne.s32.totalorder %s151, %s153
    %p157 = scmp.eq.s32.totalorder %s21, 0
    %p158 = por %p156, %p157
    %p159 = scmp.ne.s32.totalorder %s151, %s153
    %p160 = scmp.eq.s32.totalorder %s26, 7
    %p161 = por %p159, %p160
    %p162 = scmp.ne.s32.totalorder %s153, %s154
    %p163 = scmp.eq.s32.totalorder %s26, 0
    %p164 = por %p162, %p163
    %p165 = scmp.ne.s32.totalorder %s153, %s154
    %p166 = scmp.eq.s32.totalorder %s27, 7
    %p167 = por %p165, %p166
    %p169 = scmp.ne.s32.totalorder %s154, %s168
    %p170 = scmp.eq.s32.totalorder %s27, 0
    %p171 = por %p169, %p170
    %s173 = sadd.s32 %s172, 1
    %p176 = scmp.eq.s32.totalorder %s21, 7
    %p177 = scmp.ne.s32.totalorder %s172, %s174
    %p178 = scmp.eq.s32.totalorder %s21, 0
    %p179 = por %p177, %p178
    %p180 = scmp.ne.s32.totalorder %s172, %s174
    %p181 = scmp.eq.s32.totalorder %s26, 7
    %p182 = por %p180, %p181
    %p183 = scmp.ne.s32.totalorder %s174, %s175
    %p184 = scmp.eq.s32.totalorder %s26, 0
    %p185 = por %p183, %p184
    %p186 = scmp.ne.s32.totalorder %s174, %s175
    %p187 = scmp.eq.s32.totalorder %s27, 7
    %p188 = por %p186, %p187
    %p190 = scmp.ne.s32.totalorder %s175, %s189
    %p191 = scmp.eq.s32.totalorder %s27, 0
    %p192 = por %p190, %p191
    %s194 = sadd.s32 %s193, 1
    %p197 = scmp.eq.s32.totalorder %s21, 7
    %p198 = scmp.ne.s32.totalorder %s193, %s195
    %p199 = scmp.eq.s32.totalorder %s21, 0
    %p200 = por %p198, %p199
    %p201 = scmp.ne.s32.totalorder %s193, %s195
    %p202 = scmp.eq.s32.totalorder %s26, 7
    %p203 = por %p201, %p202
    %p204 = scmp.ne.s32.totalorder %s195, %s196
    %p205 = scmp.eq.s32.totalorder %s26, 0
    %p206 = por %p204, %p205
    %p207 = scmp.ne.s32.totalorder %s195, %s196
    %p208 = scmp.eq.s32.totalorder %s27, 7
    %p209 = por %p207, %p208
    %p211 = scmp.ne.s32.totalorder %s196, %s210
    %p212 = scmp.eq.s32.totalorder %s27, 0
    %p213 = por %p211, %p212
    %s215 = sadd.s32 %s214, 1
    %p218 = scmp.eq.s32.totalorder %s21, 7
    %p219 = scmp.ne.s32.totalorder %s214, %s216
    %p220 = scmp.eq.s32.totalorder %s21, 0
    %p221 = por %p219, %p220
    %p222 = scmp.ne.s32.totalorder %s214, %s216
    %p223 = scmp.eq.s32.totalorder %s26, 7
    %p224 = por %p222, %p223
    %p225 = scmp.ne.s32.totalorder %s216, %s217
    %p226 = scmp.eq.s32.totalorder %s26, 0
    %p227 = por %p225, %p226
    %p228 = scmp.ne.s32.totalorder %s216, %s217
    %p229 = scmp.eq.s32.totalorder %s27, 7
    %p230 = por %p228, %p229
    %p232 = scmp.ne.s32.totalorder %s217, %s231
    %p233 = scmp.eq.s32.totalorder %s27, 0
    %p234 = por %p232, %p233
    %s236 = sadd.s32 %s235, 1
    %p239 = scmp.eq.s32.totalorder %s21, 7
    %p240 = scmp.ne.s32.totalorder %s235, %s237
    %p241 = scmp.eq.s32.totalorder %s21, 0
    %p242 = por %p240, %p241
    %p243 = scmp.ne.s32.totalorder %s235, %s237
    %p244 = scmp.eq.s32.totalorder %s26, 7
    %p245 = por %p243, %p244
    %p246 = scmp.ne.s32.totalorder %s237, %s238
    %p247 = scmp.eq.s32.totalorder %s26, 0
    %p248 = por %p246, %p247
    %p249 = scmp.ne.s32.totalorder %s237, %s238
    %p250 = scmp.eq.s32.totalorder %s27, 7
    %p251 = por %p249, %p250
    %p253 = scmp.ne.s32.totalorder %s238, %s252
    %p254 = scmp.eq.s32.totalorder %s27, 0
    %p255 = por %p253, %p254
    %s257 = sadd.s32 %s256, 1
    %p260 = scmp.eq.s32.totalorder %s21, 7
    %p261 = scmp.ne.s32.totalorder %s256, %s258
    %p262 = scmp.eq.s32.totalorder %s21, 0
    %p263 = por %p261, %p262
    %p264 = scmp.ne.s32.totalorder %s256, %s258
    %p265 = scmp.eq.s32.totalorder %s26, 7
    %p266 = por %p264, %p265
    %p267 = scmp.ne.s32.totalorder %s258, %s259
    %p268 = scmp.eq.s32.totalorder %s26, 0
    %p269 = por %p267, %p268
    %p270 = scmp.ne.s32.totalorder %s258, %s259
    %p271 = scmp.eq.s32.totalorder %s27, 7
    %p272 = por %p270, %p271
    %p274 = scmp.ne.s32.totalorder %s259, %s273
    %p275 = scmp.eq.s32.totalorder %s27, 0
    %p276 = por %p274, %p275
    %s278 = sadd.s32 %s277, 1
    %p281 = scmp.eq.s32.totalorder %s21, 7
    %p282 = scmp.ne.s32.totalorder %s277, %s279
    %p283 = scmp.eq.s32.totalorder %s21, 0
    %p284 = por %p282, %p283
    %p285 = scmp.ne.s32.totalorder %s277, %s279
    %p286 = scmp.eq.s32.totalorder %s26, 7
    %p287 = por %p285, %p286
    %p288 = scmp.ne.s32.totalorder %s279, %s280
    %p289 = scmp.eq.s32.totalorder %s26, 0
    %p290 = por %p288, %p289
    %p291 = scmp.ne.s32.totalorder %s279, %s280
    %p292 = scmp.eq.s32.totalorder %s27, 7
    %p293 = por %p291, %p292
    %p295 = scmp.ne.s32.totalorder %s280, %s294
    %p296 = scmp.eq.s32.totalorder %s27, 0
    %p297 = por %p295, %p296
    %s299 = sadd.s32 %s298, 1
    %p302 = scmp.eq.s32.totalorder %s21, 7
    %p303 = scmp.ne.s32.totalorder %s298, %s300
    %p304 = scmp.eq.s32.totalorder %s21, 0
    %p305 = por %p303, %p304
    %p306 = scmp.ne.s32.totalorder %s298, %s300
    %p307 = scmp.eq.s32.totalorder %s26, 7
    %p308 = por %p306, %p307
    %p309 = scmp.ne.s32.totalorder %s300, %s301
    %p310 = scmp.eq.s32.totalorder %s26, 0
    %p311 = por %p309, %p310
    %p312 = scmp.ne.s32.totalorder %s300, %s301
    %p313 = scmp.eq.s32.totalorder %s27, 7
    %p314 = por %p312, %p313
    %p316 = scmp.ne.s32.totalorder %s301, %s315
    %p317 = scmp.eq.s32.totalorder %s27, 0
    %p318 = por %p316, %p317
    %s320 = sadd.s32 %s319, 1
    %p323 = scmp.eq.s32.totalorder %s21, 7
    %p324 = scmp.ne.s32.totalorder %s319, %s321
    %p325 = scmp.eq.s32.totalorder %s21, 0
    %p326 = por %p324, %p325
    %p327 = scmp.ne.s32.totalorder %s319, %s321
    %p328 = scmp.eq.s32.totalorder %s26, 7
    %p329 = por %p327, %p328
    %p330 = scmp.ne.s32.totalorder %s321, %s322
    %p331 = scmp.eq.s32.totalorder %s26, 0
    %p332 = por %p330, %p331
    %p333 = scmp.ne.s32.totalorder %s321, %s322
    %p334 = scmp.eq.s32.totalorder %s27, 7
    %p335 = por %p333, %p334
    %p337 = scmp.ne.s32.totalorder %s322, %s336
    %p338 = scmp.eq.s32.totalorder %s27, 0
    %p339 = por %p337, %p338
    %s341 = sadd.s32 %s340, 1
    %p344 = scmp.eq.s32.totalorder %s21, 7
    %p345 = scmp.ne.s32.totalorder %s340, %s342
    %p346 = scmp.eq.s32.totalorder %s21, 0
    %p347 = por %p345, %p346
    %p348 = scmp.ne.s32.totalorder %s340, %s342
    %p349 = scmp.eq.s32.totalorder %s26, 7
    %p350 = por %p348, %p349
    %p351 = scmp.ne.s32.totalorder %s342, %s343
    %p352 = scmp.eq.s32.totalorder %s26, 0
    %p353 = por %p351, %p352
    %p354 = scmp.ne.s32.totalorder %s342, %s343
    %p355 = scmp.eq.s32.totalorder %s27, 7
    %p356 = por %p354, %p355
    %p358 = scmp.ne.s32.totalorder %s343, %s357
    %p359 = scmp.eq.s32.totalorder %s27, 0
    %p360 = por %p358, %p359
    %s361 = ssub.s32 %s29, %s36
    %p362 = scmp.eq.s32.totalorder %s361, 0
    %s364 = sadd.s32 %s363, 1
    %s365 = scalar_select %p362, %s363, %s364
    %p368 = pneg %p362
    %p369 = scmp.eq.s32.totalorder %s21, 7
    %p370 = por %p368, %p369
    %p371 = scmp.ne.s32.totalorder %s363, %s366
    %p372 = scmp.eq.s32.totalorder %s21, 0
    %p373 = por %p371, %p372
    %p374 = scmp.ne.s32.totalorder %s363, %s366
    %p375 = scmp.eq.s32.totalorder %s26, 7
    %p376 = por %p374, %p375
    %p377 = scmp.ne.s32.totalorder %s366, %s367
    %p378 = scmp.eq.s32.totalorder %s26, 0
    %p379 = por %p377, %p378
    %p380 = scmp.ne.s32.totalorder %s366, %s367
    %p381 = scmp.eq.s32.totalorder %s27, 7
    %p382 = por %p380, %p381
    %p384 = scmp.ne.s32.totalorder %s367, %s383
    %p385 = scmp.eq.s32.totalorder %s27, 0
    %p386 = por %p384, %p385
    %p387 = scmp.le.s32.totalorder 1, %s21
    %p388 = scmp.lt.s32.totalorder %s21, 9
    %p389 = pnand %p387, %p388
    %p390 = pneg %p389
    // Predicated region
    $region9: #{nn_regression_forward.1} parent=5 // pred_check
      _
    $region10: #{nn_regression_forward.1} parent=5 // pred_check_branch
      %392 = sbr.rel (%p389) target = $region12
    $region11: #{nn_regression_forward.1} parent=5 // pred_region
      %s393 = ssub.s32 %s21, 1
      // Predicated region
      $region13: #{nn_regression_forward.1} parent=11 // pred_check
        %p394 = pneg %p80
      $region14: #{nn_regression_forward.1} parent=11 // pred_check_branch
        %396 = sbr.rel (%p394) target = $region16
      $region15: #{nn_regression_forward.1} parent=11 // pred_region
        _
      $region16: #{nn_regression_forward.1} parent=11 // pred_fallthru
        _
      // Predicated region
      $region17: #{nn_regression_forward.1} parent=11 // pred_check
        %p397 = pneg %p101
      $region18: #{nn_regression_forward.1} parent=11 // pred_check_branch
        %399 = sbr.rel (%p397) target = $region20
      $region19: #{nn_regression_forward.1} parent=11 // pred_region
        _
      $region20: #{nn_regression_forward.1} parent=11 // pred_fallthru
        _
      // Predicated region
      $region21: #{nn_regression_forward.1} parent=11 // pred_check
        %p400 = pneg %p122
      $region22: #{nn_regression_forward.1} parent=11 // pred_check_branch
        %402 = sbr.rel (%p400) target = $region24
      $region23: #{nn_regression_forward.1} parent=11 // pred_region
        _
      $region24: #{nn_regression_forward.1} parent=11 // pred_fallthru
        _
      // Predicated region
      $region25: #{nn_regression_forward.1} parent=11 // pred_check
        %p403 = pneg %p143
      $region26: #{nn_regression_forward.1} parent=11 // pred_check_branch
        %405 = sbr.rel (%p403) target = $region28
      $region27: #{nn_regression_forward.1} parent=11 // pred_region
        _
      $region28: #{nn_regression_forward.1} parent=11 // pred_fallthru
        _
      // Predicated region
      $region29: #{nn_regression_forward.1} parent=11 // pred_check
        %p406 = pneg %p164
      $region30: #{nn_regression_forward.1} parent=11 // pred_check_branch
        %408 = sbr.rel (%p406) target = $region32
      $region31: #{nn_regression_forward.1} parent=11 // pred_region
        _
      $region32: #{nn_regression_forward.1} parent=11 // pred_fallthru
        _
      // Predicated region
      $region33: #{nn_regression_forward.1} parent=11 // pred_check
        %p409 = pneg %p185
      $region34: #{nn_regression_forward.1} parent=11 // pred_check_branch
        %411 = sbr.rel (%p409) target = $region36
      $region35: #{nn_regression_forward.1} parent=11 // pred_region
        _
      $region36: #{nn_regression_forward.1} parent=11 // pred_fallthru
        _
      // Predicated region
      $region37: #{nn_regression_forward.1} parent=11 // pred_check
        %p412 = pneg %p206
      $region38: #{nn_regression_forward.1} parent=11 // pred_check_branch
        %414 = sbr.rel (%p412) target = $region40
      $region39: #{nn_regression_forward.1} parent=11 // pred_region
        _
      $region40: #{nn_regression_forward.1} parent=11 // pred_fallthru
        _
      // Predicated region
      $region41: #{nn_regression_forward.1} parent=11 // pred_check
        %p415 = pneg %p227
      $region42: #{nn_regression_forward.1} parent=11 // pred_check_branch
        %417 = sbr.rel (%p415) target = $region44
      $region43: #{nn_regression_forward.1} parent=11 // pred_region
        _
      $region44: #{nn_regression_forward.1} parent=11 // pred_fallthru
        _
      // Predicated region
      $region45: #{nn_regression_forward.1} parent=11 // pred_check
        %p418 = pneg %p248
      $region46: #{nn_regression_forward.1} parent=11 // pred_check_branch
        %420 = sbr.rel (%p418) target = $region48
      $region47: #{nn_regression_forward.1} parent=11 // pred_region
        _
      $region48: #{nn_regression_forward.1} parent=11 // pred_fallthru
        _
      // Predicated region
      $region49: #{nn_regression_forward.1} parent=11 // pred_check
        %p421 = pneg %p269
      $region50: #{nn_regression_forward.1} parent=11 // pred_check_branch
        %423 = sbr.rel (%p421) target = $region52
      $region51: #{nn_regression_forward.1} parent=11 // pred_region
        _
      $region52: #{nn_regression_forward.1} parent=11 // pred_fallthru
        _
      // Predicated region
      $region53: #{nn_regression_forward.1} parent=11 // pred_check
        %p424 = pneg %p290
      $region54: #{nn_regression_forward.1} parent=11 // pred_check_branch
        %426 = sbr.rel (%p424) target = $region56
      $region55: #{nn_regression_forward.1} parent=11 // pred_region
        _
      $region56: #{nn_regression_forward.1} parent=11 // pred_fallthru
        _
      // Predicated region
      $region57: #{nn_regression_forward.1} parent=11 // pred_check
        %p427 = pneg %p311
      $region58: #{nn_regression_forward.1} parent=11 // pred_check_branch
        %429 = sbr.rel (%p427) target = $region60
      $region59: #{nn_regression_forward.1} parent=11 // pred_region
        _
      $region60: #{nn_regression_forward.1} parent=11 // pred_fallthru
        _
      // Predicated region
      $region61: #{nn_regression_forward.1} parent=11 // pred_check
        %p430 = pneg %p332
      $region62: #{nn_regression_forward.1} parent=11 // pred_check_branch
        %432 = sbr.rel (%p430) target = $region64
      $region63: #{nn_regression_forward.1} parent=11 // pred_region
        _
      $region64: #{nn_regression_forward.1} parent=11 // pred_fallthru
        _
      // Predicated region
      $region65: #{nn_regression_forward.1} parent=11 // pred_check
        %p433 = pneg %p353
      $region66: #{nn_regression_forward.1} parent=11 // pred_check_branch
        %435 = sbr.rel (%p433) target = $region68
      $region67: #{nn_regression_forward.1} parent=11 // pred_region
        _
      $region68: #{nn_regression_forward.1} parent=11 // pred_fallthru
        _
    $region12: #{nn_regression_forward.1} parent=5 // pred_fallthru
      _
    %p436 = scmp.lt.s32.totalorder %s21, 8
    // Predicated region
    $region69: #{nn_regression_forward.1} parent=5 // pred_check
      %p437 = pneg %p436
    $region70: #{nn_regression_forward.1} parent=5 // pred_check_branch
      %439 = sbr.rel (%p437) target = $region72
    $region71: #{nn_regression_forward.1} parent=5 // pred_region
      // Predicated region
      $region73: #{nn_regression_forward.1} parent=71 // pred_check
        %p440 = pneg %p53
      $region74: #{nn_regression_forward.1} parent=71 // pred_check_branch
        %442 = sbr.rel (%p440) target = $region76
      $region75: #{nn_regression_forward.1} parent=71 // pred_region
        %s443 = smul.u32 4, %s29
        %p444 = scmp.lt.s32.totalorder %s443, 7
        %s445 = scalar_select %p444, %s443, 7
        %s446 = smul.addr %s445, 8
        %s447 = scalar_lea.vmem %s0, %s446
        %s448 = smul.u32 4, %s29
      $region76: #{nn_regression_forward.1} parent=71 // pred_fallthru
        _
    $region72: #{nn_regression_forward.1} parent=5 // pred_fallthru
      _
    %p449 = scmp.le.s32.totalorder 1, %s21
    %p450 = scmp.lt.s32.totalorder %s21, 9
    %p451 = pnand %p449, %p450
    %p452 = pneg %p451
    // Predicated region
    $region77: #{nn_regression_forward.1} parent=5 // pred_check
      _
    $region78: #{nn_regression_forward.1} parent=5 // pred_check_branch
      %454 = sbr.rel (%p451) target = $region80
    $region79: #{nn_regression_forward.1} parent=5 // pred_region
      %s455 = ssub.s32 %s21, 1
      %s456 = smul.u32 4, %s31
      %p457 = scmp.lt.s32.totalorder %s456, 7
      %s458 = scalar_select %p457, %s456, 7
      %s459 = smul.addr %s458, 8
      %s460 = scalar_lea.vmem %s0, %s459
      %p461 = pneg %p59
      %p462 = pneg %p56
      %p463 = pneg %p80
      %p464 = pneg %p77
      %p465 = pneg %p101
      %p466 = pneg %p98
      %p467 = pneg %p122
      %p468 = pneg %p119
      %p469 = pneg %p143
      %p470 = pneg %p140
      %p471 = pneg %p164
      %p472 = pneg %p161
      %p473 = pneg %p185
      %p474 = pneg %p182
      %p475 = pneg %p206
      %p476 = pneg %p203
      %p477 = pneg %p227
      %p478 = pneg %p224
      %p479 = pneg %p248
      %p480 = pneg %p245
      %p481 = pneg %p269
      %p482 = pneg %p266
      %p483 = pneg %p290
      %p484 = pneg %p287
      %p485 = pneg %p311
      %p486 = pneg %p308
      %p487 = pneg %p332
      %p488 = pneg %p329
      %p489 = pneg %p353
      %p490 = pneg %p350
      %p491 = pneg %p379
      %p492 = pneg %p376
      %s493 = smul.u32 4, %s31
      %p494 = scmp.lt.s32.totalorder %s493, 7
      %s495 = scalar_select %p494, %s493, 7
      %s496 = smul.addr %s495, 8
      %s497 = scalar_lea.vmem %s15, %s496
      %s498 = smul.u32 4, %s31
      %p499 = scmp.lt.s32.totalorder %s498, 7
      %s500 = scalar_select %p499, %s498, 7
      %s501 = smul.addr %s500, 8
      %s502 = scalar_lea.vmem %s0, %s501
      %s503 = smul.u32 4, %s31
      %s504 = smul.u32 4, %s31
      %p505 = scmp.lt.s32.totalorder %s504, 7
      %s506 = scalar_select %p505, %s504, 7
      %s507 = smul.addr %s506, 8
      %s508 = scalar_lea.vmem %s15, %s507
      %s509 = smul.u32 4, %s31
      %s510 = smul.u32 %s31, 32
      %v511 = vlaneseq
      %v512 = vshrl.u32 %v511, 7
      %v513 = vadd.s32 %v512, 8
      %v514 = vadd.s32 %v512, 16
      %v515 = vadd.s32 %v512, 24
      %v516 = vstv %s510
      %v517 = vadd.s32 %v512, %v516
      %v518 = vadd.s32 %v513, %v516
      %v519 = vadd.s32 %v514, %v516
      %v520 = vadd.s32 %v515, %v516
      %vm521 = vcmp.lt.s32.totalorder %v517, 50
      %vm522 = vcmp.lt.s32.totalorder %v518, 50
      %vm523 = vcmp.lt.s32.totalorder %v519, 50
      %vm524 = vcmp.lt.s32.totalorder %v520, 50
      %v525 = vsel %vm521, 1, 0
      %v526 = vsel %vm522, 1, 0
      %v527 = vsel %vm523, 1, 0
      %v528 = vsel %vm524, 1, 0
      %v529 = vcvt.s32.f32 %v525
      %v530 = vcvt.s32.f32 %v526
      %v531 = vcvt.s32.f32 %v527
      %v532 = vcvt.s32.f32 %v528
      %p533 = scmp.eq.s32.totalorder %s30, 0
      %p534 = scmp.eq.s32.totalorder %s31, 0
      %p535 = pnand %p533, %p534
      %p536 = pneg %p535
      // Predicated region
      $region81: #{nn_regression_forward.1} parent=79 // pred_check
        _
      $region82: #{nn_regression_forward.1} parent=79 // pred_check_branch
        %538 = sbr.rel (%p535) target = $region84
      $region83: #{nn_regression_forward.1} parent=79 // pred_region
        %vm539 = vcmask 516096
        %540 = vst.msk [vmem:[#allocation5] sm:$0x1] %vm539, 0.0
        %541 = vst.msk [vmem:[#allocation6] sm:$0x1] %vm539, 0.0
        %v542 = vlaneseq
        %vm543 = vcmp.ge.s32.totalorder %v542, 0
        %vm544 = vcmp.lt.s32.totalorder %v542, 256
        %vm545 = vmand %vm543, %vm544
        %546 = vst.msk [vmem:[#allocation7] sm:$0x3] %vm545, 0.0
        %547 = vst.msk [vmem:[#allocation8] sm:$0x3] %vm545, 0.0
        %vm548 = vcmp.lt.s32.totalorder %v542, 512
        %vm549 = vmand %vm543, %vm548
        %550 = vst.msk [vmem:[#allocation9] sm:$0xf] %vm549, 0.0
        %551 = vst.msk [vmem:[#allocation10] sm:$0xf] %vm549, 0.0
      $region84: #{nn_regression_forward.1} parent=79 // pred_fallthru
        _
      // Predicated region
      $region85: #{nn_regression_forward.1} parent=79 // pred_check
        %p552 = pneg %p533
      $region86: #{nn_regression_forward.1} parent=79 // pred_check_branch
        %554 = sbr.rel (%p552) target = $region88
      $region87: #{nn_regression_forward.1} parent=79 // pred_region
        %v555 = vld [vmem:[%s502] sm:$0xff]
        %v556 = vld [vmem:[%s502 + $0x8] sm:$0xff]
        %v557 = vld [vmem:[%s502 + $0x10] sm:$0xff]
        %v558 = vld [vmem:[%s502 + $0x18] sm:$0xff]
        %v559 = vld [vmem:[%s1] sm:$0xff]
        %v560 = vld [vmem:[%s1 + $0x8] sm:$0xff]
        %v561 = vld [vmem:[%s2] sm:$0x1]
        %v563 = vlaneseq
        %v564 = vshrl.u32 %v563, 7
        %v565 = vsub.s32 0, %v564
        %v566 = vrot.slane %v561, %v565
        %vm568 = vcmask 130048
        %v570 = vsel %vm568, %v555, 0
        %v573 = vsel %vm568, %v556, 0
        %v576 = vsel %vm568, %v557, 0
        %v579 = vsel %vm568, %v558, 0
        %581 = vmatprep.subr.mxu0 0.0
        %582 = vmatpush1.msra.mxu0 0.0
        %583 = vmatprep.subr.mxu0 0.0
        %584 = vmatpush1.msra.mxu0 0.0
        %585 = vmatprep.subr.mxu0 0.0
        %586 = vmatpush1.msra.mxu0 0.0
        %587 = vmatprep.subr.mxu0 0.0
        %588 = vmatpush1.msra.mxu0 0.0
        %589 = vmatprep.subr.mxu0 0.0
        %590 = vmatpush1.msra.mxu0 0.0
        %591 = vmatprep.subr.mxu0 0.0
        %592 = vmatpush1.msra.mxu0 0.0
        %593 = vmatprep.subr.mxu0 0.0
        %594 = vmatpush1.msra.mxu0 0.0
        %595 = vmatprep.subr.mxu0 0.0
        %596 = vmatpush1.msra.mxu0 0.0
        %597 = vmatprep.subr.mxu0 0.0
        %598 = vmatpush1.msra.mxu0 0.0
        %599 = vmatprep.subr.mxu0 0.0
        %600 = vmatpush1.msra.mxu0 0.0
        %601 = vmatprep.subr.mxu0 0.0
        %602 = vmatpush1.msra.mxu0 0.0
        %603 = vmatprep.subr.mxu0 0.0
        %604 = vmatpush1.msra.mxu0 0.0
        %605 = vmatprep.subr.mxu0 0.0
        %606 = vmatpush1.msra.mxu0 0.0
        %607 = vmatprep.subr.mxu0 0.0
        %608 = vmatpush1.msra.mxu0 0.0
        %609 = vmatprep.subr.mxu0 0.0
        %610 = vmatpush1.msra.mxu0 %v560
        %611 = vmatprep.subr.mxu0 0.0
        %612 = vmatpush1.msra.mxu0 %v559
        %613 = vmatprep.subr.mxu0 0.0
        %614 = vmatpush2.msra.mxu0 0.0
        %615 = vmatprep.subr.mxu0 0.0
        %616 = vmatpush2.msra.mxu0 0.0
        %617 = vmatprep.subr.mxu0 0.0
        %618 = vmatpush2.msra.mxu0 0.0
        %619 = vmatprep.subr.mxu0 0.0
        %620 = vmatpush2.msra.mxu0 0.0
        %621 = vmatprep.subr.mxu0 0.0
        %622 = vmatpush2.msra.mxu0 0.0
        %623 = vmatprep.subr.mxu0 0.0
        %624 = vmatpush2.msra.mxu0 0.0
        %625 = vmatprep.subr.mxu0 0.0
        %626 = vmatpush2.msra.mxu0 0.0
        %627 = vmatprep.subr.mxu0 0.0
        %628 = vmatpush2.msra.mxu0 0.0
        %629 = vmatprep.subr.mxu0 0.0
        %630 = vmatpush2.msra.mxu0 0.0
        %631 = vmatprep.subr.mxu0 0.0
        %632 = vmatpush2.msra.mxu0 0.0
        %633 = vmatprep.subr.mxu0 0.0
        %634 = vmatpush2.msra.mxu0 0.0
        %635 = vmatprep.subr.mxu0 0.0
        %636 = vmatpush2.msra.mxu0 0.0
        %637 = vmatprep.subr.mxu0 0.0
        %638 = vmatpush2.msra.mxu0 0.0
        %639 = vmatprep.subr.mxu0 0.0
        %640 = vmatpush2.msra.mxu0 0.0
        %641 = vmatprep.subr.mxu0 0.0
        %642 = vmatpush2.msra.mxu0 0.0
        %643 = vmatprep.subr.mxu0 0.0
        %644 = vmatpush2.msra.mxu0 0.0
        %645 = vmatprep.mubr.f32.mxu0 0.0
        %646 = vmatmul.mubr.f32.gmra.mxu0 %v570
        %v647 = vpop.f32.mrf.mxu0
        %v648 = vadd.f32 %v566, %v647
        %v649 = vpop.f32.mrf.mxu0
        %650 = vmatprep.mubr.f32.mxu0 0.0
        %651 = vmatmul.mubr.f32.gmra.mxu0 %v573
        %v652 = vpop.f32.mrf.mxu0
        %v653 = vadd.f32 %v566, %v652
        %v654 = vpop.f32.mrf.mxu0
        %655 = vmatprep.mubr.f32.mxu0 0.0
        %656 = vmatmul.mubr.f32.gmra.mxu0 %v576
        %v657 = vpop.f32.mrf.mxu0
        %v658 = vadd.f32 %v566, %v657
        %v659 = vpop.f32.mrf.mxu0
        %660 = vmatprep.mubr.f32.mxu0 0.0
        %661 = vmatmul.mubr.f32.gmra.mxu0 %v579
        %v662 = vpop.f32.mrf.mxu0
        %v663 = vadd.f32 %v566, %v662
        %v664 = vpop.f32.mrf.mxu0
        %665 = vdwg.mxu0
        %s666 = scalar_lea.vmem [#allocation2], %s510
        %vm667 = vcmask 523264
        %668 = vst.msk [vmem:[%s666] sm:$0xff] %vm667, %v648
        %669 = vst.msk [vmem:[%s666 + $0x8] sm:$0xff] %vm667, %v653
        %670 = vst.msk [vmem:[%s666 + $0x10] sm:$0xff] %vm667, %v658
        %671 = vst.msk [vmem:[%s666 + $0x18] sm:$0xff] %vm667, %v663
        %v672 = vmul.f32 %v648, %v529
        %v673 = vmul.f32 %v653, %v530
        %v674 = vmul.f32 %v658, %v531
        %v675 = vmul.f32 %v663, %v532
        %v676 = vld [vmem:[#allocation5] sm:$0x1]
        %v677 = vsel %vm667, %v672, 0.0
        %v678 = vsel %vm667, %v673, 0.0
        %v679 = vadd.f32 %v677, %v678
        %v680 = vsel %vm667, %v674, 0.0
        %v681 = vadd.f32 %v679, %v680
        %v682 = vsel %vm667, %v675, 0.0
        %v683 = vadd.f32 %v681, %v682
        %v684 = vrot.slane %v683, 4
        %v685 = vadd.f32 %v683, %v684
        %v686 = vrot.slane %v685, 2
        %v687 = vadd.f32 %v685, %v686
        %v688 = vrot.slane %v687, 1
        %v689 = vadd.f32 %v687, %v688
        %v690 = vadd.f32 %v676, %v689
        %vm691 = vcmask 516096
        %692 = vst.msk [vmem:[#allocation5] sm:$0x1] %vm691, %v690
        %v693 = vld [vmem:[#allocation6] sm:$0x1]
        %v694 = vmul.f32 %v672, %v672
        %v695 = vmul.f32 %v673, %v673
        %v696 = vmul.f32 %v674, %v674
        %v697 = vmul.f32 %v675, %v675
        %v698 = vsel %vm667, %v694, 0.0
        %v699 = vsel %vm667, %v695, 0.0
        %v700 = vadd.f32 %v698, %v699
        %v701 = vsel %vm667, %v696, 0.0
        %v702 = vadd.f32 %v700, %v701
        %v703 = vsel %vm667, %v697, 0.0
        %v704 = vadd.f32 %v702, %v703
        %v705 = vrot.slane %v704, 4
        %v706 = vadd.f32 %v704, %v705
        %v707 = vrot.slane %v706, 2
        %v708 = vadd.f32 %v706, %v707
        %v709 = vrot.slane %v708, 1
        %v710 = vadd.f32 %v708, %v709
        %v711 = vadd.f32 %v693, %v710
        %712 = vst.msk [vmem:[#allocation6] sm:$0x1] %vm691, %v711
      $region88: #{nn_regression_forward.1} parent=79 // pred_fallthru
        _
      %p713 = scmp.eq.s32.totalorder %s30, 1
      // Predicated region
      $region89: #{nn_regression_forward.1} parent=79 // pred_check
        %p714 = pneg %p713
      $region90: #{nn_regression_forward.1} parent=79 // pred_check_branch
        %716 = sbr.rel (%p714) target = $region92
      $region91: #{nn_regression_forward.1} parent=79 // pred_region
        %s717 = scalar_lea.vmem [#allocation2], %s510
        %v718 = vld [vmem:[%s717] sm:$0xff]
        %v719 = vld [vmem:[%s717 + $0x8] sm:$0xff]
        %v720 = vld [vmem:[%s717 + $0x10] sm:$0xff]
        %v721 = vld [vmem:[%s717 + $0x18] sm:$0xff]
        %v722 = vld [vmem:[#allocation5] sm:$0x1]
        %v723 = vmul.f32 %v722, 0.02
        %v724 = vld [vmem:[#allocation6] sm:$0x1]
        %v725 = vmul.f32 %v724, 0.02
        %v726 = vmul.f32 %v723, %v723
        %v727 = vsub.f32 %v725, %v726
        %v729 = vlaneseq
        %v730 = vshrl.u32 %v729, 7
        %v731 = vsub.s32 0, %v730
        %v732 = vrot.slane %v723, %v731
        %v734 = vsub.f32 %v718, %v732
        %v735 = vsub.f32 %v719, %v732
        %v736 = vsub.f32 %v720, %v732
        %v737 = vsub.f32 %v721, %v732
        %v738 = vadd.f32 %v727, 1e-05
        %v739 = vrsqrt.pop %v738
        %v741 = vlaneseq
        %v742 = vshrl.u32 %v741, 7
        %v743 = vsub.s32 0, %v742
        %v744 = vrot.slane %v739, %v743
        %v746 = vmul.f32 %v734, %v744
        %v747 = vmul.f32 %v735, %v744
        %v748 = vmul.f32 %v736, %v744
        %v749 = vmul.f32 %v737, %v744
        %v750 = vld [vmem:[%s3] sm:$0x1]
        %v752 = vlaneseq
        %v753 = vshrl.u32 %v752, 7
        %v754 = vsub.s32 0, %v753
        %v755 = vrot.slane %v750, %v754
        %v757 = vmul.f32 %v746, %v755
        %v758 = vmul.f32 %v747, %v755
        %v759 = vmul.f32 %v748, %v755
        %v760 = vmul.f32 %v749, %v755
        %v761 = vld [vmem:[%s4] sm:$0x1]
        %v763 = vlaneseq
        %v764 = vshrl.u32 %v763, 7
        %v765 = vsub.s32 0, %v764
        %v766 = vrot.slane %v761, %v765
        %v768 = vadd.f32 %v757, %v766
        %v769 = vadd.f32 %v758, %v766
        %v770 = vadd.f32 %v759, %v766
        %v771 = vadd.f32 %v760, %v766
        %v772 = vmax.f32 %v768, 0.0
        %v773 = vmax.f32 %v769, 0.0
        %v774 = vmax.f32 %v770, 0.0
        %v775 = vmax.f32 %v771, 0.0
        %v776 = vld [vmem:[%s5] sm:$0xff]
        %v777 = vld [vmem:[%s5 + $0x8] sm:$0xff]
        %v778 = vld [vmem:[%s5 + $0x10] sm:$0xff]
        %v779 = vld [vmem:[%s5 + $0x18] sm:$0xff]
        %v780 = vld [vmem:[%s5 + $0x20] sm:$0xff]
        %v781 = vld [vmem:[%s5 + $0x28] sm:$0xff]
        %v782 = vld [vmem:[%s5 + $0x30] sm:$0xff]
        %v783 = vld [vmem:[%s5 + $0x38] sm:$0xff]
        %v784 = vld [vmem:[%s5 + $0x40] sm:$0xff]
        %v785 = vld [vmem:[%s5 + $0x48] sm:$0xff]
        %v786 = vld [vmem:[%s5 + $0x50] sm:$0xff]
        %v787 = vld [vmem:[%s5 + $0x58] sm:$0xff]
        %v788 = vld [vmem:[%s5 + $0x60] sm:$0xff]
        %v789 = vld [vmem:[%s5 + $0x68] sm:$0xff]
        %v790 = vld [vmem:[%s5 + $0x70] sm:$0xff]
        %v791 = vld [vmem:[%s5 + $0x78] sm:$0xff]
        %v792 = vld [vmem:[%s6] sm:$0x3]
        %v794 = vlaneseq
        %v795 = vshrl.u32 %v794, 7
        %v796 = vsub.s32 0, %v795
        %v797 = vrot.slane %v792, %v796
        %v798 = vlaneseq
        %v799 = vshrl.u32 %v798, 7
        %v800 = vsub.s32 1, %v799
        %v801 = vrot.slane %v792, %v800
        %vm804 = vcmask 523264
        %v806 = vsel %vm804, %v772, 0
        %v809 = vsel %vm804, %v773, 0
        %v812 = vsel %vm804, %v774, 0
        %v815 = vsel %vm804, %v775, 0
        %817 = vmatprep.subr.mxu0 0.0
        %818 = vmatpush1.msra.mxu0 0.0
        %819 = vmatprep.subr.mxu0 0.0
        %820 = vmatpush1.msra.mxu0 0.0
        %821 = vmatprep.subr.mxu0 0.0
        %822 = vmatpush1.msra.mxu0 0.0
        %823 = vmatprep.subr.mxu0 0.0
        %824 = vmatpush1.msra.mxu0 0.0
        %825 = vmatprep.subr.mxu0 0.0
        %826 = vmatpush1.msra.mxu0 0.0
        %827 = vmatprep.subr.mxu0 0.0
        %828 = vmatpush1.msra.mxu0 0.0
        %829 = vmatprep.subr.mxu0 0.0
        %830 = vmatpush1.msra.mxu0 0.0
        %831 = vmatprep.subr.mxu0 0.0
        %832 = vmatpush1.msra.mxu0 0.0
        %833 = vmatprep.subr.mxu0 %v791
        %834 = vmatpush1.msra.mxu0 %v790
        %835 = vmatprep.subr.mxu0 %v789
        %836 = vmatpush1.msra.mxu0 %v788
        %837 = vmatprep.subr.mxu0 %v787
        %838 = vmatpush1.msra.mxu0 %v786
        %839 = vmatprep.subr.mxu0 %v785
        %840 = vmatpush1.msra.mxu0 %v784
        %841 = vmatprep.subr.mxu0 %v783
        %842 = vmatpush1.msra.mxu0 %v782
        %843 = vmatprep.subr.mxu0 %v781
        %844 = vmatpush1.msra.mxu0 %v780
        %845 = vmatprep.subr.mxu0 %v779
        %846 = vmatpush1.msra.mxu0 %v778
        %847 = vmatprep.subr.mxu0 %v777
        %848 = vmatpush1.msra.mxu0 %v776
        %849 = vmatprep.subr.mxu0 0.0
        %850 = vmatpush2.msra.mxu0 0.0
        %851 = vmatprep.subr.mxu0 0.0
        %852 = vmatpush2.msra.mxu0 0.0
        %853 = vmatprep.subr.mxu0 0.0
        %854 = vmatpush2.msra.mxu0 0.0
        %855 = vmatprep.subr.mxu0 0.0
        %856 = vmatpush2.msra.mxu0 0.0
        %857 = vmatprep.subr.mxu0 0.0
        %858 = vmatpush2.msra.mxu0 0.0
        %859 = vmatprep.subr.mxu0 0.0
        %860 = vmatpush2.msra.mxu0 0.0
        %861 = vmatprep.subr.mxu0 0.0
        %862 = vmatpush2.msra.mxu0 0.0
        %863 = vmatprep.subr.mxu0 0.0
        %864 = vmatpush2.msra.mxu0 0.0
        %865 = vmatprep.subr.mxu0 0.0
        %866 = vmatpush2.msra.mxu0 0.0
        %867 = vmatprep.subr.mxu0 0.0
        %868 = vmatpush2.msra.mxu0 0.0
        %869 = vmatprep.subr.mxu0 0.0
        %870 = vmatpush2.msra.mxu0 0.0
        %871 = vmatprep.subr.mxu0 0.0
        %872 = vmatpush2.msra.mxu0 0.0
        %873 = vmatprep.subr.mxu0 0.0
        %874 = vmatpush2.msra.mxu0 0.0
        %875 = vmatprep.subr.mxu0 0.0
        %876 = vmatpush2.msra.mxu0 0.0
        %877 = vmatprep.subr.mxu0 0.0
        %878 = vmatpush2.msra.mxu0 0.0
        %879 = vmatprep.subr.mxu0 0.0
        %880 = vmatpush2.msra.mxu0 0.0
        %881 = vmatprep.mubr.f32.mxu0 0.0
        %882 = vmatmul.mubr.f32.gmra.mxu0 %v806
        %v883 = vpop.f32.mrf.mxu0
        %v884 = vadd.f32 %v797, %v883
        %v885 = vpop.f32.mrf.mxu0
        %v886 = vadd.f32 %v801, %v885
        %887 = vmatprep.mubr.f32.mxu0 0.0
        %888 = vmatmul.mubr.f32.gmra.mxu0 %v809
        %v889 = vpop.f32.mrf.mxu0
        %v890 = vadd.f32 %v797, %v889
        %v891 = vpop.f32.mrf.mxu0
        %v892 = vadd.f32 %v801, %v891
        %893 = vmatprep.mubr.f32.mxu0 0.0
        %894 = vmatmul.mubr.f32.gmra.mxu0 %v812
        %v895 = vpop.f32.mrf.mxu0
        %v896 = vadd.f32 %v797, %v895
        %v897 = vpop.f32.mrf.mxu0
        %v898 = vadd.f32 %v801, %v897
        %899 = vmatprep.mubr.f32.mxu0 0.0
        %900 = vmatmul.mubr.f32.gmra.mxu0 %v815
        %v901 = vpop.f32.mrf.mxu0
        %v902 = vadd.f32 %v797, %v901
        %v903 = vpop.f32.mrf.mxu0
        %v904 = vadd.f32 %v801, %v903
        %905 = vdwg.mxu0
        %s906 = sshra.s32 %s510, 3
        %s907 = sand.u32 %s510, 7
        %s908 = smul.u32 %s906, 2
        %s909 = smul.addr %s908, 8
        %s910 = scalar_lea.vmem [#allocation3], %s909
        %911 = vst [vmem:[%s910] sm:$0xff] %v884
        %912 = vst [vmem:[%s910 + $0x8] sm:$0xff] %v886
        %913 = vst [vmem:[%s910 + $0x10] sm:$0xff] %v890
        %914 = vst [vmem:[%s910 + $0x18] sm:$0xff] %v892
        %915 = vst [vmem:[%s910 + $0x20] sm:$0xff] %v896
        %916 = vst [vmem:[%s910 + $0x28] sm:$0xff] %v898
        %917 = vst [vmem:[%s910 + $0x30] sm:$0xff] %v902
        %918 = vst [vmem:[%s910 + $0x38] sm:$0xff] %v904
        %v919 = vmul.f32 %v884, %v529
        %v920 = vmul.f32 %v886, %v529
        %v921 = vmul.f32 %v890, %v530
        %v922 = vmul.f32 %v892, %v530
        %v923 = vmul.f32 %v896, %v531
        %v924 = vmul.f32 %v898, %v531
        %v925 = vmul.f32 %v902, %v532
        %v926 = vmul.f32 %v904, %v532
        %v927 = vld [vmem:[#allocation7] sm:$0x3]
        %v928 = vadd.f32 %v919, %v921
        %v929 = vadd.f32 %v928, %v923
        %v930 = vadd.f32 %v929, %v925
        %v931 = vrot.slane %v930, 4
        %v932 = vadd.f32 %v930, %v931
        %v933 = vrot.slane %v932, 2
        %v934 = vadd.f32 %v932, %v933
        %v935 = vrot.slane %v934, 1
        %v936 = vadd.f32 %v934, %v935
        %v937 = vadd.f32 %v920, %v922
        %v938 = vadd.f32 %v937, %v924
        %v939 = vadd.f32 %v938, %v926
        %v940 = vrot.slane %v939, 4
        %v941 = vadd.f32 %v939, %v940
        %v942 = vrot.slane %v941, 2
        %v943 = vadd.f32 %v941, %v942
        %v944 = vrot.slane %v943, 1
        %v945 = vadd.f32 %v943, %v944
        %v948 = vcombine.low %v936, %v945
        %v950 = vunpack.c.l.s4 1966171168
        %v951 = vunpack.c.0.s8 %v950
        %v952 = vlaneseq
        %v953 = vshrl.u32 %v952, 7
        %v954 = vsub.s32 %v951, %v953
        %v955 = vrot.slane %v948, %v954
        %v957 = vunpack.c.l.s4 1966171168
        %v958 = vunpack.c.0.s8 %v957
        %v959 = vlaneseq
        %v960 = vshrl.u32 %v959, 7
        %v961 = vsub.s32 %v958, %v960
        %v962 = vrot.slane %v955, %v961
        %v964 = vadd.f32 %v927, %v962
        %v965 = vlaneseq
        %vm966 = vcmp.ge.s32.totalorder %v965, 0
        %vm967 = vcmp.lt.s32.totalorder %v965, 256
        %vm968 = vmand %vm966, %vm967
        %969 = vst.msk [vmem:[#allocation7] sm:$0x3] %vm968, %v964
        %v970 = vld [vmem:[#allocation8] sm:$0x3]
        %v971 = vmul.f32 %v919, %v919
        %v972 = vmul.f32 %v920, %v920
        %v973 = vmul.f32 %v921, %v921
        %v974 = vmul.f32 %v922, %v922
        %v975 = vmul.f32 %v923, %v923
        %v976 = vmul.f32 %v924, %v924
        %v977 = vmul.f32 %v925, %v925
        %v978 = vmul.f32 %v926, %v926
        %v979 = vadd.f32 %v971, %v973
        %v980 = vadd.f32 %v979, %v975
        %v981 = vadd.f32 %v980, %v977
        %v982 = vrot.slane %v981, 4
        %v983 = vadd.f32 %v981, %v982
        %v984 = vrot.slane %v983, 2
        %v985 = vadd.f32 %v983, %v984
        %v986 = vrot.slane %v985, 1
        %v987 = vadd.f32 %v985, %v986
        %v988 = vadd.f32 %v972, %v974
        %v989 = vadd.f32 %v988, %v976
        %v990 = vadd.f32 %v989, %v978
        %v991 = vrot.slane %v990, 4
        %v992 = vadd.f32 %v990, %v991
        %v993 = vrot.slane %v992, 2
        %v994 = vadd.f32 %v992, %v993
        %v995 = vrot.slane %v994, 1
        %v996 = vadd.f32 %v994, %v995
        %v999 = vcombine.low %v987, %v996
        %v1001 = vunpack.c.l.s4 1966171168
        %v1002 = vunpack.c.0.s8 %v1001
        %v1003 = vlaneseq
        %v1004 = vshrl.u32 %v1003, 7
        %v1005 = vsub.s32 %v1002, %v1004
        %v1006 = vrot.slane %v999, %v1005
        %v1008 = vunpack.c.l.s4 1966171168
        %v1009 = vunpack.c.0.s8 %v1008
        %v1010 = vlaneseq
        %v1011 = vshrl.u32 %v1010, 7
        %v1012 = vsub.s32 %v1009, %v1011
        %v1013 = vrot.slane %v1006, %v1012
        %v1015 = vadd.f32 %v970, %v1013
        %1016 = vst.msk [vmem:[#allocation8] sm:$0x3] %vm968, %v1015
      $region92: #{nn_regression_forward.1} parent=79 // pred_fallthru
        _
      %p1017 = scmp.eq.s32.totalorder %s30, 2
      // Predicated region
      $region93: #{nn_regression_forward.1} parent=79 // pred_check
        %p1018 = pneg %p1017
      $region94: #{nn_regression_forward.1} parent=79 // pred_check_branch
        %1020 = sbr.rel (%p1018) target = $region96
      $region95: #{nn_regression_forward.1} parent=79 // pred_region
        %s1021 = sshra.s32 %s510, 3
        %s1022 = sand.u32 %s510, 7
        %s1023 = smul.u32 %s1021, 2
        %s1024 = smul.addr %s1023, 8
        %s1025 = scalar_lea.vmem [#allocation3], %s1024
        %v1026 = vld [vmem:[%s1025] sm:$0xff]
        %v1027 = vld [vmem:[%s1025 + $0x8] sm:$0xff]
        %v1028 = vld [vmem:[%s1025 + $0x10] sm:$0xff]
        %v1029 = vld [vmem:[%s1025 + $0x18] sm:$0xff]
        %v1030 = vld [vmem:[%s1025 + $0x20] sm:$0xff]
        %v1031 = vld [vmem:[%s1025 + $0x28] sm:$0xff]
        %v1032 = vld [vmem:[%s1025 + $0x30] sm:$0xff]
        %v1033 = vld [vmem:[%s1025 + $0x38] sm:$0xff]
        %v1034 = vld [vmem:[#allocation7] sm:$0x3]
        %v1035 = vmul.f32 %v1034, 0.02
        %v1036 = vld [vmem:[#allocation8] sm:$0x3]
        %v1037 = vmul.f32 %v1036, 0.02
        %v1038 = vmul.f32 %v1035, %v1035
        %v1039 = vsub.f32 %v1037, %v1038
        %v1041 = vlaneseq
        %v1042 = vshrl.u32 %v1041, 7
        %v1043 = vsub.s32 0, %v1042
        %v1044 = vrot.slane %v1035, %v1043
        %v1045 = vlaneseq
        %v1046 = vshrl.u32 %v1045, 7
        %v1047 = vsub.s32 1, %v1046
        %v1048 = vrot.slane %v1035, %v1047
        %v1051 = vsub.f32 %v1026, %v1044
        %v1052 = vsub.f32 %v1027, %v1048
        %v1053 = vsub.f32 %v1028, %v1044
        %v1054 = vsub.f32 %v1029, %v1048
        %v1055 = vsub.f32 %v1030, %v1044
        %v1056 = vsub.f32 %v1031, %v1048
        %v1057 = vsub.f32 %v1032, %v1044
        %v1058 = vsub.f32 %v1033, %v1048
        %v1059 = vadd.f32 %v1039, 1e-05
        %v1060 = vrsqrt.pop %v1059
        %v1062 = vlaneseq
        %v1063 = vshrl.u32 %v1062, 7
        %v1064 = vsub.s32 0, %v1063
        %v1065 = vrot.slane %v1060, %v1064
        %v1066 = vlaneseq
        %v1067 = vshrl.u32 %v1066, 7
        %v1068 = vsub.s32 1, %v1067
        %v1069 = vrot.slane %v1060, %v1068
        %v1072 = vmul.f32 %v1051, %v1065
        %v1073 = vmul.f32 %v1052, %v1069
        %v1074 = vmul.f32 %v1053, %v1065
        %v1075 = vmul.f32 %v1054, %v1069
        %v1076 = vmul.f32 %v1055, %v1065
        %v1077 = vmul.f32 %v1056, %v1069
        %v1078 = vmul.f32 %v1057, %v1065
        %v1079 = vmul.f32 %v1058, %v1069
        %v1080 = vld [vmem:[%s7] sm:$0x3]
        %v1082 = vlaneseq
        %v1083 = vshrl.u32 %v1082, 7
        %v1084 = vsub.s32 0, %v1083
        %v1085 = vrot.slane %v1080, %v1084
        %v1086 = vlaneseq
        %v1087 = vshrl.u32 %v1086, 7
        %v1088 = vsub.s32 1, %v1087
        %v1089 = vrot.slane %v1080, %v1088
        %v1092 = vmul.f32 %v1072, %v1085
        %v1093 = vmul.f32 %v1073, %v1089
        %v1094 = vmul.f32 %v1074, %v1085
        %v1095 = vmul.f32 %v1075, %v1089
        %v1096 = vmul.f32 %v1076, %v1085
        %v1097 = vmul.f32 %v1077, %v1089
        %v1098 = vmul.f32 %v1078, %v1085
        %v1099 = vmul.f32 %v1079, %v1089
        %v1100 = vld [vmem:[%s8] sm:$0x3]
        %v1102 = vlaneseq
        %v1103 = vshrl.u32 %v1102, 7
        %v1104 = vsub.s32 0, %v1103
        %v1105 = vrot.slane %v1100, %v1104
        %v1106 = vlaneseq
        %v1107 = vshrl.u32 %v1106, 7
        %v1108 = vsub.s32 1, %v1107
        %v1109 = vrot.slane %v1100, %v1108
        %v1112 = vadd.f32 %v1092, %v1105
        %v1113 = vadd.f32 %v1093, %v1109
        %v1114 = vadd.f32 %v1094, %v1105
        %v1115 = vadd.f32 %v1095, %v1109
        %v1116 = vadd.f32 %v1096, %v1105
        %v1117 = vadd.f32 %v1097, %v1109
        %v1118 = vadd.f32 %v1098, %v1105
        %v1119 = vadd.f32 %v1099, %v1109
        %v1120 = vmax.f32 %v1112, 0.0
        %v1121 = vmax.f32 %v1113, 0.0
        %v1122 = vmax.f32 %v1114, 0.0
        %v1123 = vmax.f32 %v1115, 0.0
        %v1124 = vmax.f32 %v1116, 0.0
        %v1125 = vmax.f32 %v1117, 0.0
        %v1126 = vmax.f32 %v1118, 0.0
        %v1127 = vmax.f32 %v1119, 0.0
        %v1128 = vld [vmem:[%s9] sm:$0xff]
        %v1129 = vld [vmem:[%s9 + $0x8] sm:$0xff]
        %v1130 = vld [vmem:[%s9 + $0x10] sm:$0xff]
        %v1131 = vld [vmem:[%s9 + $0x18] sm:$0xff]
        %v1132 = vld [vmem:[%s9 + $0x20] sm:$0xff]
        %v1133 = vld [vmem:[%s9 + $0x28] sm:$0xff]
        %v1134 = vld [vmem:[%s9 + $0x30] sm:$0xff]
        %v1135 = vld [vmem:[%s9 + $0x38] sm:$0xff]
        %v1136 = vld [vmem:[%s9 + $0x40] sm:$0xff]
        %v1137 = vld [vmem:[%s9 + $0x48] sm:$0xff]
        %v1138 = vld [vmem:[%s9 + $0x50] sm:$0xff]
        %v1139 = vld [vmem:[%s9 + $0x58] sm:$0xff]
        %v1140 = vld [vmem:[%s9 + $0x60] sm:$0xff]
        %v1141 = vld [vmem:[%s9 + $0x68] sm:$0xff]
        %v1142 = vld [vmem:[%s9 + $0x70] sm:$0xff]
        %v1143 = vld [vmem:[%s9 + $0x78] sm:$0xff]
        %v1144 = vld [vmem:[%s9 + $0x80] sm:$0xff]
        %v1145 = vld [vmem:[%s9 + $0x88] sm:$0xff]
        %v1146 = vld [vmem:[%s9 + $0x90] sm:$0xff]
        %v1147 = vld [vmem:[%s9 + $0x98] sm:$0xff]
        %v1148 = vld [vmem:[%s9 + $0xa0] sm:$0xff]
        %v1149 = vld [vmem:[%s9 + $0xa8] sm:$0xff]
        %v1150 = vld [vmem:[%s9 + $0xb0] sm:$0xff]
        %v1151 = vld [vmem:[%s9 + $0xb8] sm:$0xff]
        %v1152 = vld [vmem:[%s9 + $0xc0] sm:$0xff]
        %v1153 = vld [vmem:[%s9 + $0xc8] sm:$0xff]
        %v1154 = vld [vmem:[%s9 + $0xd0] sm:$0xff]
        %v1155 = vld [vmem:[%s9 + $0xd8] sm:$0xff]
        %v1156 = vld [vmem:[%s9 + $0xe0] sm:$0xff]
        %v1157 = vld [vmem:[%s9 + $0xe8] sm:$0xff]
        %v1158 = vld [vmem:[%s9 + $0xf0] sm:$0xff]
        %v1159 = vld [vmem:[%s9 + $0xf8] sm:$0xff]
        %v1160 = vld [vmem:[%s9 + $0x100] sm:$0xff]
        %v1161 = vld [vmem:[%s9 + $0x108] sm:$0xff]
        %v1162 = vld [vmem:[%s9 + $0x110] sm:$0xff]
        %v1163 = vld [vmem:[%s9 + $0x118] sm:$0xff]
        %v1164 = vld [vmem:[%s9 + $0x120] sm:$0xff]
        %v1165 = vld [vmem:[%s9 + $0x128] sm:$0xff]
        %v1166 = vld [vmem:[%s9 + $0x130] sm:$0xff]
        %v1167 = vld [vmem:[%s9 + $0x138] sm:$0xff]
        %v1168 = vld [vmem:[%s9 + $0x140] sm:$0xff]
        %v1169 = vld [vmem:[%s9 + $0x148] sm:$0xff]
        %v1170 = vld [vmem:[%s9 + $0x150] sm:$0xff]
        %v1171 = vld [vmem:[%s9 + $0x158] sm:$0xff]
        %v1172 = vld [vmem:[%s9 + $0x160] sm:$0xff]
        %v1173 = vld [vmem:[%s9 + $0x168] sm:$0xff]
        %v1174 = vld [vmem:[%s9 + $0x170] sm:$0xff]
        %v1175 = vld [vmem:[%s9 + $0x178] sm:$0xff]
        %v1176 = vld [vmem:[%s9 + $0x180] sm:$0xff]
        %v1177 = vld [vmem:[%s9 + $0x188] sm:$0xff]
        %v1178 = vld [vmem:[%s9 + $0x190] sm:$0xff]
        %v1179 = vld [vmem:[%s9 + $0x198] sm:$0xff]
        %v1180 = vld [vmem:[%s9 + $0x1a0] sm:$0xff]
        %v1181 = vld [vmem:[%s9 + $0x1a8] sm:$0xff]
        %v1182 = vld [vmem:[%s9 + $0x1b0] sm:$0xff]
        %v1183 = vld [vmem:[%s9 + $0x1b8] sm:$0xff]
        %v1184 = vld [vmem:[%s9 + $0x1c0] sm:$0xff]
        %v1185 = vld [vmem:[%s9 + $0x1c8] sm:$0xff]
        %v1186 = vld [vmem:[%s9 + $0x1d0] sm:$0xff]
        %v1187 = vld [vmem:[%s9 + $0x1d8] sm:$0xff]
        %v1188 = vld [vmem:[%s9 + $0x1e0] sm:$0xff]
        %v1189 = vld [vmem:[%s9 + $0x1e8] sm:$0xff]
        %v1190 = vld [vmem:[%s9 + $0x1f0] sm:$0xff]
        %v1191 = vld [vmem:[%s9 + $0x1f8] sm:$0xff]
        %v1192 = vld [vmem:[%s9 + $0x200] sm:$0xff]
        %v1193 = vld [vmem:[%s9 + $0x208] sm:$0xff]
        %v1194 = vld [vmem:[%s9 + $0x210] sm:$0xff]
        %v1195 = vld [vmem:[%s9 + $0x218] sm:$0xff]
        %v1196 = vld [vmem:[%s9 + $0x220] sm:$0xff]
        %v1197 = vld [vmem:[%s9 + $0x228] sm:$0xff]
        %v1198 = vld [vmem:[%s9 + $0x230] sm:$0xff]
        %v1199 = vld [vmem:[%s9 + $0x238] sm:$0xff]
        %v1200 = vld [vmem:[%s9 + $0x240] sm:$0xff]
        %v1201 = vld [vmem:[%s9 + $0x248] sm:$0xff]
        %v1202 = vld [vmem:[%s9 + $0x250] sm:$0xff]
        %v1203 = vld [vmem:[%s9 + $0x258] sm:$0xff]
        %v1204 = vld [vmem:[%s9 + $0x260] sm:$0xff]
        %v1205 = vld [vmem:[%s9 + $0x268] sm:$0xff]
        %v1206 = vld [vmem:[%s9 + $0x270] sm:$0xff]
        %v1207 = vld [vmem:[%s9 + $0x278] sm:$0xff]
        %v1208 = vld [vmem:[%s9 + $0x280] sm:$0xff]
        %v1209 = vld [vmem:[%s9 + $0x288] sm:$0xff]
        %v1210 = vld [vmem:[%s9 + $0x290] sm:$0xff]
        %v1211 = vld [vmem:[%s9 + $0x298] sm:$0xff]
        %v1212 = vld [vmem:[%s9 + $0x2a0] sm:$0xff]
        %v1213 = vld [vmem:[%s9 + $0x2a8] sm:$0xff]
        %v1214 = vld [vmem:[%s9 + $0x2b0] sm:$0xff]
        %v1215 = vld [vmem:[%s9 + $0x2b8] sm:$0xff]
        %v1216 = vld [vmem:[%s9 + $0x2c0] sm:$0xff]
        %v1217 = vld [vmem:[%s9 + $0x2c8] sm:$0xff]
        %v1218 = vld [vmem:[%s9 + $0x2d0] sm:$0xff]
        %v1219 = vld [vmem:[%s9 + $0x2d8] sm:$0xff]
        %v1220 = vld [vmem:[%s9 + $0x2e0] sm:$0xff]
        %v1221 = vld [vmem:[%s9 + $0x2e8] sm:$0xff]
        %v1222 = vld [vmem:[%s9 + $0x2f0] sm:$0xff]
        %v1223 = vld [vmem:[%s9 + $0x2f8] sm:$0xff]
        %v1224 = vld [vmem:[%s9 + $0x300] sm:$0xff]
        %v1225 = vld [vmem:[%s9 + $0x308] sm:$0xff]
        %v1226 = vld [vmem:[%s9 + $0x310] sm:$0xff]
        %v1227 = vld [vmem:[%s9 + $0x318] sm:$0xff]
        %v1228 = vld [vmem:[%s9 + $0x320] sm:$0xff]
        %v1229 = vld [vmem:[%s9 + $0x328] sm:$0xff]
        %v1230 = vld [vmem:[%s9 + $0x330] sm:$0xff]
        %v1231 = vld [vmem:[%s9 + $0x338] sm:$0xff]
        %v1232 = vld [vmem:[%s9 + $0x340] sm:$0xff]
        %v1233 = vld [vmem:[%s9 + $0x348] sm:$0xff]
        %v1234 = vld [vmem:[%s9 + $0x350] sm:$0xff]
        %v1235 = vld [vmem:[%s9 + $0x358] sm:$0xff]
        %v1236 = vld [vmem:[%s9 + $0x360] sm:$0xff]
        %v1237 = vld [vmem:[%s9 + $0x368] sm:$0xff]
        %v1238 = vld [vmem:[%s9 + $0x370] sm:$0xff]
        %v1239 = vld [vmem:[%s9 + $0x378] sm:$0xff]
        %v1240 = vld [vmem:[%s9 + $0x380] sm:$0xff]
        %v1241 = vld [vmem:[%s9 + $0x388] sm:$0xff]
        %v1242 = vld [vmem:[%s9 + $0x390] sm:$0xff]
        %v1243 = vld [vmem:[%s9 + $0x398] sm:$0xff]
        %v1244 = vld [vmem:[%s9 + $0x3a0] sm:$0xff]
        %v1245 = vld [vmem:[%s9 + $0x3a8] sm:$0xff]
        %v1246 = vld [vmem:[%s9 + $0x3b0] sm:$0xff]
        %v1247 = vld [vmem:[%s9 + $0x3b8] sm:$0xff]
        %v1248 = vld [vmem:[%s9 + $0x3c0] sm:$0xff]
        %v1249 = vld [vmem:[%s9 + $0x3c8] sm:$0xff]
        %v1250 = vld [vmem:[%s9 + $0x3d0] sm:$0xff]
        %v1251 = vld [vmem:[%s9 + $0x3d8] sm:$0xff]
        %v1252 = vld [vmem:[%s9 + $0x3e0] sm:$0xff]
        %v1253 = vld [vmem:[%s9 + $0x3e8] sm:$0xff]
        %v1254 = vld [vmem:[%s9 + $0x3f0] sm:$0xff]
        %v1255 = vld [vmem:[%s9 + $0x3f8] sm:$0xff]
        %v1256 = vld [vmem:[%s10] sm:$0xf]
        %v1258 = vlaneseq
        %v1259 = vshrl.u32 %v1258, 7
        %v1260 = vsub.s32 0, %v1259
        %v1261 = vrot.slane %v1256, %v1260
        %v1262 = vlaneseq
        %v1263 = vshrl.u32 %v1262, 7
        %v1264 = vsub.s32 1, %v1263
        %v1265 = vrot.slane %v1256, %v1264
        %v1266 = vlaneseq
        %v1267 = vshrl.u32 %v1266, 7
        %v1268 = vsub.s32 2, %v1267
        %v1269 = vrot.slane %v1256, %v1268
        %v1270 = vlaneseq
        %v1271 = vshrl.u32 %v1270, 7
        %v1272 = vsub.s32 3, %v1271
        %v1273 = vrot.slane %v1256, %v1272
        %1278 = vmatprep.subr.mxu0 %v1189
        %1279 = vmatpush1.msra.mxu0 %v1188
        %1280 = vmatprep.subr.mxu0 %v1185
        %1281 = vmatpush1.msra.mxu0 %v1184
        %1282 = vmatprep.subr.mxu0 %v1181
        %1283 = vmatpush1.msra.mxu0 %v1180
        %1284 = vmatprep.subr.mxu0 %v1177
        %1285 = vmatpush1.msra.mxu0 %v1176
        %1286 = vmatprep.subr.mxu0 %v1173
        %1287 = vmatpush1.msra.mxu0 %v1172
        %1288 = vmatprep.subr.mxu0 %v1169
        %1289 = vmatpush1.msra.mxu0 %v1168
        %1290 = vmatprep.subr.mxu0 %v1165
        %1291 = vmatpush1.msra.mxu0 %v1164
        %1292 = vmatprep.subr.mxu0 %v1161
        %1293 = vmatpush1.msra.mxu0 %v1160
        %1294 = vmatprep.subr.mxu0 %v1157
        %1295 = vmatpush1.msra.mxu0 %v1156
        %1296 = vmatprep.subr.mxu0 %v1153
        %1297 = vmatpush1.msra.mxu0 %v1152
        %1298 = vmatprep.subr.mxu0 %v1149
        %1299 = vmatpush1.msra.mxu0 %v1148
        %1300 = vmatprep.subr.mxu0 %v1145
        %1301 = vmatpush1.msra.mxu0 %v1144
        %1302 = vmatprep.subr.mxu0 %v1141
        %1303 = vmatpush1.msra.mxu0 %v1140
        %1304 = vmatprep.subr.mxu0 %v1137
        %1305 = vmatpush1.msra.mxu0 %v1136
        %1306 = vmatprep.subr.mxu0 %v1133
        %1307 = vmatpush1.msra.mxu0 %v1132
        %1308 = vmatprep.subr.mxu0 %v1129
        %1309 = vmatpush1.msra.mxu0 %v1128
        %1310 = vmatprep.subr.mxu0 %v1253
        %1311 = vmatpush2.msra.mxu0 %v1252
        %1312 = vmatprep.subr.mxu0 %v1249
        %1313 = vmatpush2.msra.mxu0 %v1248
        %1314 = vmatprep.subr.mxu0 %v1245
        %1315 = vmatpush2.msra.mxu0 %v1244
        %1316 = vmatprep.subr.mxu0 %v1241
        %1317 = vmatpush2.msra.mxu0 %v1240
        %1318 = vmatprep.subr.mxu0 %v1237
        %1319 = vmatpush2.msra.mxu0 %v1236
        %1320 = vmatprep.subr.mxu0 %v1233
        %1321 = vmatpush2.msra.mxu0 %v1232
        %1322 = vmatprep.subr.mxu0 %v1229
        %1323 = vmatpush2.msra.mxu0 %v1228
        %1324 = vmatprep.subr.mxu0 %v1225
        %1325 = vmatpush2.msra.mxu0 %v1224
        %1326 = vmatprep.subr.mxu0 %v1221
        %1327 = vmatpush2.msra.mxu0 %v1220
        %1328 = vmatprep.subr.mxu0 %v1217
        %1329 = vmatpush2.msra.mxu0 %v1216
        %1330 = vmatprep.subr.mxu0 %v1213
        %1331 = vmatpush2.msra.mxu0 %v1212
        %1332 = vmatprep.subr.mxu0 %v1209
        %1333 = vmatpush2.msra.mxu0 %v1208
        %1334 = vmatprep.subr.mxu0 %v1205
        %1335 = vmatpush2.msra.mxu0 %v1204
        %1336 = vmatprep.subr.mxu0 %v1201
        %1337 = vmatpush2.msra.mxu0 %v1200
        %1338 = vmatprep.subr.mxu0 %v1197
        %1339 = vmatpush2.msra.mxu0 %v1196
        %1340 = vmatprep.subr.mxu0 %v1193
        %1341 = vmatpush2.msra.mxu0 %v1192
        %1342 = vmatprep.mubr.f32.mxu0 %v1121
        %1343 = vmatmul.mubr.f32.gmra.mxu0 %v1120
        %v1344 = vpop.f32.mrf.mxu0
        %v1345 = vadd.f32 %v1261, %v1344
        %v1346 = vpop.f32.mrf.mxu0
        %v1347 = vadd.f32 %v1265, %v1346
        %1348 = vmatprep.mubr.f32.mxu0 %v1123
        %1349 = vmatmul.mubr.f32.gmra.mxu0 %v1122
        %v1350 = vpop.f32.mrf.mxu0
        %v1351 = vadd.f32 %v1261, %v1350
        %v1352 = vpop.f32.mrf.mxu0
        %v1353 = vadd.f32 %v1265, %v1352
        %1354 = vmatprep.mubr.f32.mxu0 %v1125
        %1355 = vmatmul.mubr.f32.gmra.mxu0 %v1124
        %v1356 = vpop.f32.mrf.mxu0
        %v1357 = vadd.f32 %v1261, %v1356
        %v1358 = vpop.f32.mrf.mxu0
        %v1359 = vadd.f32 %v1265, %v1358
        %1360 = vmatprep.mubr.f32.mxu0 %v1127
        %1361 = vmatmul.mubr.f32.gmra.mxu0 %v1126
        %v1362 = vpop.f32.mrf.mxu0
        %v1363 = vadd.f32 %v1261, %v1362
        %v1364 = vpop.f32.mrf.mxu0
        %v1365 = vadd.f32 %v1265, %v1364
        %1366 = vdwg.mxu0
        %1367 = vmatprep.subr.mxu0 %v1191
        %1368 = vmatpush1.msra.mxu0 %v1190
        %1369 = vmatprep.subr.mxu0 %v1187
        %1370 = vmatpush1.msra.mxu0 %v1186
        %1371 = vmatprep.subr.mxu0 %v1183
        %1372 = vmatpush1.msra.mxu0 %v1182
        %1373 = vmatprep.subr.mxu0 %v1179
        %1374 = vmatpush1.msra.mxu0 %v1178
        %1375 = vmatprep.subr.mxu0 %v1175
        %1376 = vmatpush1.msra.mxu0 %v1174
        %1377 = vmatprep.subr.mxu0 %v1171
        %1378 = vmatpush1.msra.mxu0 %v1170
        %1379 = vmatprep.subr.mxu0 %v1167
        %1380 = vmatpush1.msra.mxu0 %v1166
        %1381 = vmatprep.subr.mxu0 %v1163
        %1382 = vmatpush1.msra.mxu0 %v1162
        %1383 = vmatprep.subr.mxu0 %v1159
        %1384 = vmatpush1.msra.mxu0 %v1158
        %1385 = vmatprep.subr.mxu0 %v1155
        %1386 = vmatpush1.msra.mxu0 %v1154
        %1387 = vmatprep.subr.mxu0 %v1151
        %1388 = vmatpush1.msra.mxu0 %v1150
        %1389 = vmatprep.subr.mxu0 %v1147
        %1390 = vmatpush1.msra.mxu0 %v1146
        %1391 = vmatprep.subr.mxu0 %v1143
        %1392 = vmatpush1.msra.mxu0 %v1142
        %1393 = vmatprep.subr.mxu0 %v1139
        %1394 = vmatpush1.msra.mxu0 %v1138
        %1395 = vmatprep.subr.mxu0 %v1135
        %1396 = vmatpush1.msra.mxu0 %v1134
        %1397 = vmatprep.subr.mxu0 %v1131
        %1398 = vmatpush1.msra.mxu0 %v1130
        %1399 = vmatprep.subr.mxu0 %v1255
        %1400 = vmatpush2.msra.mxu0 %v1254
        %1401 = vmatprep.subr.mxu0 %v1251
        %1402 = vmatpush2.msra.mxu0 %v1250
        %1403 = vmatprep.subr.mxu0 %v1247
        %1404 = vmatpush2.msra.mxu0 %v1246
        %1405 = vmatprep.subr.mxu0 %v1243
        %1406 = vmatpush2.msra.mxu0 %v1242
        %1407 = vmatprep.subr.mxu0 %v1239
        %1408 = vmatpush2.msra.mxu0 %v1238
        %1409 = vmatprep.subr.mxu0 %v1235
        %1410 = vmatpush2.msra.mxu0 %v1234
        %1411 = vmatprep.subr.mxu0 %v1231
        %1412 = vmatpush2.msra.mxu0 %v1230
        %1413 = vmatprep.subr.mxu0 %v1227
        %1414 = vmatpush2.msra.mxu0 %v1226
        %1415 = vmatprep.subr.mxu0 %v1223
        %1416 = vmatpush2.msra.mxu0 %v1222
        %1417 = vmatprep.subr.mxu0 %v1219
        %1418 = vmatpush2.msra.mxu0 %v1218
        %1419 = vmatprep.subr.mxu0 %v1215
        %1420 = vmatpush2.msra.mxu0 %v1214
        %1421 = vmatprep.subr.mxu0 %v1211
        %1422 = vmatpush2.msra.mxu0 %v1210
        %1423 = vmatprep.subr.mxu0 %v1207
        %1424 = vmatpush2.msra.mxu0 %v1206
        %1425 = vmatprep.subr.mxu0 %v1203
        %1426 = vmatpush2.msra.mxu0 %v1202
        %1427 = vmatprep.subr.mxu0 %v1199
        %1428 = vmatpush2.msra.mxu0 %v1198
        %1429 = vmatprep.subr.mxu0 %v1195
        %1430 = vmatpush2.msra.mxu0 %v1194
        %1431 = vmatprep.mubr.f32.mxu0 %v1121
        %1432 = vmatmul.mubr.f32.gmra.mxu0 %v1120
        %v1433 = vpop.f32.mrf.mxu0
        %v1434 = vadd.f32 %v1269, %v1433
        %v1435 = vpop.f32.mrf.mxu0
        %v1436 = vadd.f32 %v1273, %v1435
        %1437 = vmatprep.mubr.f32.mxu0 %v1123
        %1438 = vmatmul.mubr.f32.gmra.mxu0 %v1122
        %v1439 = vpop.f32.mrf.mxu0
        %v1440 = vadd.f32 %v1269, %v1439
        %v1441 = vpop.f32.mrf.mxu0
        %v1442 = vadd.f32 %v1273, %v1441
        %1443 = vmatprep.mubr.f32.mxu0 %v1125
        %1444 = vmatmul.mubr.f32.gmra.mxu0 %v1124
        %v1445 = vpop.f32.mrf.mxu0
        %v1446 = vadd.f32 %v1269, %v1445
        %v1447 = vpop.f32.mrf.mxu0
        %v1448 = vadd.f32 %v1273, %v1447
        %1449 = vmatprep.mubr.f32.mxu0 %v1127
        %1450 = vmatmul.mubr.f32.gmra.mxu0 %v1126
        %v1451 = vpop.f32.mrf.mxu0
        %v1452 = vadd.f32 %v1269, %v1451
        %v1453 = vpop.f32.mrf.mxu0
        %v1454 = vadd.f32 %v1273, %v1453
        %1455 = vdwg.mxu0
        %s1456 = smul.u32 %s1021, 4
        %s1457 = smul.addr %s1456, 8
        %s1458 = scalar_lea.vmem [#allocation4], %s1457
        %1459 = vst [vmem:[%s1458] sm:$0xff] %v1345
        %1460 = vst [vmem:[%s1458 + $0x8] sm:$0xff] %v1347
        %1461 = vst [vmem:[%s1458 + $0x10] sm:$0xff] %v1434
        %1462 = vst [vmem:[%s1458 + $0x18] sm:$0xff] %v1436
        %1463 = vst [vmem:[%s1458 + $0x20] sm:$0xff] %v1351
        %1464 = vst [vmem:[%s1458 + $0x28] sm:$0xff] %v1353
        %1465 = vst [vmem:[%s1458 + $0x30] sm:$0xff] %v1440
        %1466 = vst [vmem:[%s1458 + $0x38] sm:$0xff] %v1442
        %1467 = vst [vmem:[%s1458 + $0x40] sm:$0xff] %v1357
        %1468 = vst [vmem:[%s1458 + $0x48] sm:$0xff] %v1359
        %1469 = vst [vmem:[%s1458 + $0x50] sm:$0xff] %v1446
        %1470 = vst [vmem:[%s1458 + $0x58] sm:$0xff] %v1448
        %1471 = vst [vmem:[%s1458 + $0x60] sm:$0xff] %v1363
        %1472 = vst [vmem:[%s1458 + $0x68] sm:$0xff] %v1365
        %1473 = vst [vmem:[%s1458 + $0x70] sm:$0xff] %v1452
        %1474 = vst [vmem:[%s1458 + $0x78] sm:$0xff] %v1454
        %v1475 = vmul.f32 %v1345, %v529
        %v1476 = vmul.f32 %v1347, %v529
        %v1477 = vmul.f32 %v1434, %v529
        %v1478 = vmul.f32 %v1436, %v529
        %v1479 = vmul.f32 %v1351, %v530
        %v1480 = vmul.f32 %v1353, %v530
        %v1481 = vmul.f32 %v1440, %v530
        %v1482 = vmul.f32 %v1442, %v530
        %v1483 = vmul.f32 %v1357, %v531
        %v1484 = vmul.f32 %v1359, %v531
        %v1485 = vmul.f32 %v1446, %v531
        %v1486 = vmul.f32 %v1448, %v531
        %v1487 = vmul.f32 %v1363, %v532
        %v1488 = vmul.f32 %v1365, %v532
        %v1489 = vmul.f32 %v1452, %v532
        %v1490 = vmul.f32 %v1454, %v532
        %v1491 = vld [vmem:[#allocation9] sm:$0xf]
        %v1492 = vadd.f32 %v1475, %v1479
        %v1493 = vadd.f32 %v1492, %v1483
        %v1494 = vadd.f32 %v1493, %v1487
        %v1495 = vrot.slane %v1494, 4
        %v1496 = vadd.f32 %v1494, %v1495
        %v1497 = vrot.slane %v1496, 2
        %v1498 = vadd.f32 %v1496, %v1497
        %v1499 = vrot.slane %v1498, 1
        %v1500 = vadd.f32 %v1498, %v1499
        %v1501 = vadd.f32 %v1476, %v1480
        %v1502 = vadd.f32 %v1501, %v1484
        %v1503 = vadd.f32 %v1502, %v1488
        %v1504 = vrot.slane %v1503, 4
        %v1505 = vadd.f32 %v1503, %v1504
        %v1506 = vrot.slane %v1505, 2
        %v1507 = vadd.f32 %v1505, %v1506
        %v1508 = vrot.slane %v1507, 1
        %v1509 = vadd.f32 %v1507, %v1508
        %v1510 = vadd.f32 %v1477, %v1481
        %v1511 = vadd.f32 %v1510, %v1485
        %v1512 = vadd.f32 %v1511, %v1489
        %v1513 = vrot.slane %v1512, 4
        %v1514 = vadd.f32 %v1512, %v1513
        %v1515 = vrot.slane %v1514, 2
        %v1516 = vadd.f32 %v1514, %v1515
        %v1517 = vrot.slane %v1516, 1
        %v1518 = vadd.f32 %v1516, %v1517
        %v1519 = vadd.f32 %v1478, %v1482
        %v1520 = vadd.f32 %v1519, %v1486
        %v1521 = vadd.f32 %v1520, %v1490
        %v1522 = vrot.slane %v1521, 4
        %v1523 = vadd.f32 %v1521, %v1522
        %v1524 = vrot.slane %v1523, 2
        %v1525 = vadd.f32 %v1523, %v1524
        %v1526 = vrot.slane %v1525, 1
        %v1527 = vadd.f32 %v1525, %v1526
        %v1532 = vcombine.low %v1500, %v1509
        %v1533 = vcombine.low %v1518, %v1527
        %v1535 = vunpack.c.l.s4 1966171168
        %v1536 = vunpack.c.0.s8 %v1535
        %v1537 = vlaneseq
        %v1538 = vshrl.u32 %v1537, 7
        %v1539 = vsub.s32 %v1536, %v1538
        %v1540 = vrot.slane %v1532, %v1539
        %v1542 = vunpack.c.l.s4 1966171168
        %v1543 = vunpack.c.0.s8 %v1542
        %v1544 = vlaneseq
        %v1545 = vshrl.u32 %v1544, 7
        %v1546 = vsub.s32 %v1543, %v1545
        %v1547 = vrot.slane %v1533, %v1546
        %v1548 = vcombine.low %v1540, %v1547
        %v1550 = vunpack.c.l.s4 1966171168
        %v1551 = vunpack.c.0.s8 %v1550
        %v1552 = vlaneseq
        %v1553 = vshrl.u32 %v1552, 7
        %v1554 = vsub.s32 %v1551, %v1553
        %v1555 = vrot.slane %v1548, %v1554
        %v1557 = vadd.f32 %v1491, %v1555
        %v1558 = vlaneseq
        %vm1559 = vcmp.ge.s32.totalorder %v1558, 0
        %vm1560 = vcmp.lt.s32.totalorder %v1558, 512
        %vm1561 = vmand %vm1559, %vm1560
        %1562 = vst.msk [vmem:[#allocation9] sm:$0xf] %vm1561, %v1557
        %v1563 = vld [vmem:[#allocation10] sm:$0xf]
        %v1564 = vmul.f32 %v1475, %v1475
        %v1565 = vmul.f32 %v1476, %v1476
        %v1566 = vmul.f32 %v1477, %v1477
        %v1567 = vmul.f32 %v1478, %v1478
        %v1568 = vmul.f32 %v1479, %v1479
        %v1569 = vmul.f32 %v1480, %v1480
        %v1570 = vmul.f32 %v1481, %v1481
        %v1571 = vmul.f32 %v1482, %v1482
        %v1572 = vmul.f32 %v1483, %v1483
        %v1573 = vmul.f32 %v1484, %v1484
        %v1574 = vmul.f32 %v1485, %v1485
        %v1575 = vmul.f32 %v1486, %v1486
        %v1576 = vmul.f32 %v1487, %v1487
        %v1577 = vmul.f32 %v1488, %v1488
        %v1578 = vmul.f32 %v1489, %v1489
        %v1579 = vmul.f32 %v1490, %v1490
        %v1580 = vadd.f32 %v1564, %v1568
        %v1581 = vadd.f32 %v1580, %v1572
        %v1582 = vadd.f32 %v1581, %v1576
        %v1583 = vrot.slane %v1582, 4
        %v1584 = vadd.f32 %v1582, %v1583
        %v1585 = vrot.slane %v1584, 2
        %v1586 = vadd.f32 %v1584, %v1585
        %v1587 = vrot.slane %v1586, 1
        %v1588 = vadd.f32 %v1586, %v1587
        %v1589 = vadd.f32 %v1565, %v1569
        %v1590 = vadd.f32 %v1589, %v1573
        %v1591 = vadd.f32 %v1590, %v1577
        %v1592 = vrot.slane %v1591, 4
        %v1593 = vadd.f32 %v1591, %v1592
        %v1594 = vrot.slane %v1593, 2
        %v1595 = vadd.f32 %v1593, %v1594
        %v1596 = vrot.slane %v1595, 1
        %v1597 = vadd.f32 %v1595, %v1596
        %v1598 = vadd.f32 %v1566, %v1570
        %v1599 = vadd.f32 %v1598, %v1574
        %v1600 = vadd.f32 %v1599, %v1578
        %v1601 = vrot.slane %v1600, 4
        %v1602 = vadd.f32 %v1600, %v1601
        %v1603 = vrot.slane %v1602, 2
        %v1604 = vadd.f32 %v1602, %v1603
        %v1605 = vrot.slane %v1604, 1
        %v1606 = vadd.f32 %v1604, %v1605
        %v1607 = vadd.f32 %v1567, %v1571
        %v1608 = vadd.f32 %v1607, %v1575
        %v1609 = vadd.f32 %v1608, %v1579
        %v1610 = vrot.slane %v1609, 4
        %v1611 = vadd.f32 %v1609, %v1610
        %v1612 = vrot.slane %v1611, 2
        %v1613 = vadd.f32 %v1611, %v1612
        %v1614 = vrot.slane %v1613, 1
        %v1615 = vadd.f32 %v1613, %v1614
        %v1620 = vcombine.low %v1588, %v1597
        %v1621 = vcombine.low %v1606, %v1615
        %v1623 = vunpack.c.l.s4 1966171168
        %v1624 = vunpack.c.0.s8 %v1623
        %v1625 = vlaneseq
        %v1626 = vshrl.u32 %v1625, 7
        %v1627 = vsub.s32 %v1624, %v1626
        %v1628 = vrot.slane %v1620, %v1627
        %v1630 = vunpack.c.l.s4 1966171168
        %v1631 = vunpack.c.0.s8 %v1630
        %v1632 = vlaneseq
        %v1633 = vshrl.u32 %v1632, 7
        %v1634 = vsub.s32 %v1631, %v1633
        %v1635 = vrot.slane %v1621, %v1634
        %v1636 = vcombine.low %v1628, %v1635
        %v1638 = vunpack.c.l.s4 1966171168
        %v1639 = vunpack.c.0.s8 %v1638
        %v1640 = vlaneseq
        %v1641 = vshrl.u32 %v1640, 7
        %v1642 = vsub.s32 %v1639, %v1641
        %v1643 = vrot.slane %v1636, %v1642
        %v1645 = vadd.f32 %v1563, %v1643
        %1646 = vst.msk [vmem:[#allocation10] sm:$0xf] %vm1561, %v1645
      $region96: #{nn_regression_forward.1} parent=79 // pred_fallthru
        _
      %p1647 = scmp.eq.s32.totalorder %s30, 3
      // Predicated region
      $region97: #{nn_regression_forward.1} parent=79 // pred_check
        %p1648 = pneg %p1647
      $region98: #{nn_regression_forward.1} parent=79 // pred_check_branch
        %1650 = sbr.rel (%p1648) target = $region100
      $region99: #{nn_regression_forward.1} parent=79 // pred_region
        %s1651 = sshra.s32 %s510, 3
        %s1652 = sand.u32 %s510, 7
        %s1653 = smul.u32 %s1651, 4
        %s1654 = smul.addr %s1653, 8
        %s1655 = scalar_lea.vmem [#allocation4], %s1654
        %v1656 = vld [vmem:[%s1655] sm:$0xff]
        %v1657 = vld [vmem:[%s1655 + $0x8] sm:$0xff]
        %v1658 = vld [vmem:[%s1655 + $0x10] sm:$0xff]
        %v1659 = vld [vmem:[%s1655 + $0x18] sm:$0xff]
        %v1660 = vld [vmem:[%s1655 + $0x20] sm:$0xff]
        %v1661 = vld [vmem:[%s1655 + $0x28] sm:$0xff]
        %v1662 = vld [vmem:[%s1655 + $0x30] sm:$0xff]
        %v1663 = vld [vmem:[%s1655 + $0x38] sm:$0xff]
        %v1664 = vld [vmem:[%s1655 + $0x40] sm:$0xff]
        %v1665 = vld [vmem:[%s1655 + $0x48] sm:$0xff]
        %v1666 = vld [vmem:[%s1655 + $0x50] sm:$0xff]
        %v1667 = vld [vmem:[%s1655 + $0x58] sm:$0xff]
        %v1668 = vld [vmem:[%s1655 + $0x60] sm:$0xff]
        %v1669 = vld [vmem:[%s1655 + $0x68] sm:$0xff]
        %v1670 = vld [vmem:[%s1655 + $0x70] sm:$0xff]
        %v1671 = vld [vmem:[%s1655 + $0x78] sm:$0xff]
        %v1672 = vld [vmem:[#allocation9] sm:$0xf]
        %v1673 = vmul.f32 %v1672, 0.02
        %v1674 = vld [vmem:[#allocation10] sm:$0xf]
        %v1675 = vmul.f32 %v1674, 0.02
        %v1676 = vmul.f32 %v1673, %v1673
        %v1677 = vsub.f32 %v1675, %v1676
        %v1679 = vlaneseq
        %v1680 = vshrl.u32 %v1679, 7
        %v1681 = vsub.s32 0, %v1680
        %v1682 = vrot.slane %v1673, %v1681
        %v1683 = vlaneseq
        %v1684 = vshrl.u32 %v1683, 7
        %v1685 = vsub.s32 1, %v1684
        %v1686 = vrot.slane %v1673, %v1685
        %v1687 = vlaneseq
        %v1688 = vshrl.u32 %v1687, 7
        %v1689 = vsub.s32 2, %v1688
        %v1690 = vrot.slane %v1673, %v1689
        %v1691 = vlaneseq
        %v1692 = vshrl.u32 %v1691, 7
        %v1693 = vsub.s32 3, %v1692
        %v1694 = vrot.slane %v1673, %v1693
        %v1699 = vsub.f32 %v1656, %v1682
        %v1700 = vsub.f32 %v1657, %v1686
        %v1701 = vsub.f32 %v1658, %v1690
        %v1702 = vsub.f32 %v1659, %v1694
        %v1703 = vsub.f32 %v1660, %v1682
        %v1704 = vsub.f32 %v1661, %v1686
        %v1705 = vsub.f32 %v1662, %v1690
        %v1706 = vsub.f32 %v1663, %v1694
        %v1707 = vsub.f32 %v1664, %v1682
        %v1708 = vsub.f32 %v1665, %v1686
        %v1709 = vsub.f32 %v1666, %v1690
        %v1710 = vsub.f32 %v1667, %v1694
        %v1711 = vsub.f32 %v1668, %v1682
        %v1712 = vsub.f32 %v1669, %v1686
        %v1713 = vsub.f32 %v1670, %v1690
        %v1714 = vsub.f32 %v1671, %v1694
        %v1715 = vadd.f32 %v1677, 1e-05
        %v1716 = vrsqrt.pop %v1715
        %v1718 = vlaneseq
        %v1719 = vshrl.u32 %v1718, 7
        %v1720 = vsub.s32 0, %v1719
        %v1721 = vrot.slane %v1716, %v1720
        %v1722 = vlaneseq
        %v1723 = vshrl.u32 %v1722, 7
        %v1724 = vsub.s32 1, %v1723
        %v1725 = vrot.slane %v1716, %v1724
        %v1726 = vlaneseq
        %v1727 = vshrl.u32 %v1726, 7
        %v1728 = vsub.s32 2, %v1727
        %v1729 = vrot.slane %v1716, %v1728
        %v1730 = vlaneseq
        %v1731 = vshrl.u32 %v1730, 7
        %v1732 = vsub.s32 3, %v1731
        %v1733 = vrot.slane %v1716, %v1732
        %v1738 = vmul.f32 %v1699, %v1721
        %v1739 = vmul.f32 %v1700, %v1725
        %v1740 = vmul.f32 %v1701, %v1729
        %v1741 = vmul.f32 %v1702, %v1733
        %v1742 = vmul.f32 %v1703, %v1721
        %v1743 = vmul.f32 %v1704, %v1725
        %v1744 = vmul.f32 %v1705, %v1729
        %v1745 = vmul.f32 %v1706, %v1733
        %v1746 = vmul.f32 %v1707, %v1721
        %v1747 = vmul.f32 %v1708, %v1725
        %v1748 = vmul.f32 %v1709, %v1729
        %v1749 = vmul.f32 %v1710, %v1733
        %v1750 = vmul.f32 %v1711, %v1721
        %v1751 = vmul.f32 %v1712, %v1725
        %v1752 = vmul.f32 %v1713, %v1729
        %v1753 = vmul.f32 %v1714, %v1733
        %v1754 = vld [vmem:[%s11] sm:$0xf]
        %v1756 = vlaneseq
        %v1757 = vshrl.u32 %v1756, 7
        %v1758 = vsub.s32 0, %v1757
        %v1759 = vrot.slane %v1754, %v1758
        %v1760 = vlaneseq
        %v1761 = vshrl.u32 %v1760, 7
        %v1762 = vsub.s32 1, %v1761
        %v1763 = vrot.slane %v1754, %v1762
        %v1764 = vlaneseq
        %v1765 = vshrl.u32 %v1764, 7
        %v1766 = vsub.s32 2, %v1765
        %v1767 = vrot.slane %v1754, %v1766
        %v1768 = vlaneseq
        %v1769 = vshrl.u32 %v1768, 7
        %v1770 = vsub.s32 3, %v1769
        %v1771 = vrot.slane %v1754, %v1770
        %v1776 = vmul.f32 %v1738, %v1759
        %v1777 = vmul.f32 %v1739, %v1763
        %v1778 = vmul.f32 %v1740, %v1767
        %v1779 = vmul.f32 %v1741, %v1771
        %v1780 = vmul.f32 %v1742, %v1759
        %v1781 = vmul.f32 %v1743, %v1763
        %v1782 = vmul.f32 %v1744, %v1767
        %v1783 = vmul.f32 %v1745, %v1771
        %v1784 = vmul.f32 %v1746, %v1759
        %v1785 = vmul.f32 %v1747, %v1763
        %v1786 = vmul.f32 %v1748, %v1767
        %v1787 = vmul.f32 %v1749, %v1771
        %v1788 = vmul.f32 %v1750, %v1759
        %v1789 = vmul.f32 %v1751, %v1763
        %v1790 = vmul.f32 %v1752, %v1767
        %v1791 = vmul.f32 %v1753, %v1771
        %v1792 = vld [vmem:[%s12] sm:$0xf]
        %v1794 = vlaneseq
        %v1795 = vshrl.u32 %v1794, 7
        %v1796 = vsub.s32 0, %v1795
        %v1797 = vrot.slane %v1792, %v1796
        %v1798 = vlaneseq
        %v1799 = vshrl.u32 %v1798, 7
        %v1800 = vsub.s32 1, %v1799
        %v1801 = vrot.slane %v1792, %v1800
        %v1802 = vlaneseq
        %v1803 = vshrl.u32 %v1802, 7
        %v1804 = vsub.s32 2, %v1803
        %v1805 = vrot.slane %v1792, %v1804
        %v1806 = vlaneseq
        %v1807 = vshrl.u32 %v1806, 7
        %v1808 = vsub.s32 3, %v1807
        %v1809 = vrot.slane %v1792, %v1808
        %v1814 = vadd.f32 %v1776, %v1797
        %v1815 = vadd.f32 %v1777, %v1801
        %v1816 = vadd.f32 %v1778, %v1805
        %v1817 = vadd.f32 %v1779, %v1809
        %v1818 = vadd.f32 %v1780, %v1797
        %v1819 = vadd.f32 %v1781, %v1801
        %v1820 = vadd.f32 %v1782, %v1805
        %v1821 = vadd.f32 %v1783, %v1809
        %v1822 = vadd.f32 %v1784, %v1797
        %v1823 = vadd.f32 %v1785, %v1801
        %v1824 = vadd.f32 %v1786, %v1805
        %v1825 = vadd.f32 %v1787, %v1809
        %v1826 = vadd.f32 %v1788, %v1797
        %v1827 = vadd.f32 %v1789, %v1801
        %v1828 = vadd.f32 %v1790, %v1805
        %v1829 = vadd.f32 %v1791, %v1809
        %v1830 = vmax.f32 %v1814, 0.0
        %v1831 = vmax.f32 %v1815, 0.0
        %v1832 = vmax.f32 %v1816, 0.0
        %v1833 = vmax.f32 %v1817, 0.0
        %v1834 = vmax.f32 %v1818, 0.0
        %v1835 = vmax.f32 %v1819, 0.0
        %v1836 = vmax.f32 %v1820, 0.0
        %v1837 = vmax.f32 %v1821, 0.0
        %v1838 = vmax.f32 %v1822, 0.0
        %v1839 = vmax.f32 %v1823, 0.0
        %v1840 = vmax.f32 %v1824, 0.0
        %v1841 = vmax.f32 %v1825, 0.0
        %v1842 = vmax.f32 %v1826, 0.0
        %v1843 = vmax.f32 %v1827, 0.0
        %v1844 = vmax.f32 %v1828, 0.0
        %v1845 = vmax.f32 %v1829, 0.0
        %v1846 = vld [vmem:[%s13] sm:$0xff]
        %v1847 = vld [vmem:[%s13 + $0x8] sm:$0xff]
        %v1848 = vld [vmem:[%s13 + $0x10] sm:$0xff]
        %v1849 = vld [vmem:[%s13 + $0x18] sm:$0xff]
        %v1850 = vld [vmem:[%s13 + $0x20] sm:$0xff]
        %v1851 = vld [vmem:[%s13 + $0x28] sm:$0xff]
        %v1852 = vld [vmem:[%s13 + $0x30] sm:$0xff]
        %v1853 = vld [vmem:[%s13 + $0x38] sm:$0xff]
        %v1854 = vld [vmem:[%s13 + $0x40] sm:$0xff]
        %v1855 = vld [vmem:[%s13 + $0x48] sm:$0xff]
        %v1856 = vld [vmem:[%s13 + $0x50] sm:$0xff]
        %v1857 = vld [vmem:[%s13 + $0x58] sm:$0xff]
        %v1858 = vld [vmem:[%s13 + $0x60] sm:$0xff]
        %v1859 = vld [vmem:[%s13 + $0x68] sm:$0xff]
        %v1860 = vld [vmem:[%s13 + $0x70] sm:$0xff]
        %v1861 = vld [vmem:[%s13 + $0x78] sm:$0xff]
        %v1862 = vld [vmem:[%s13 + $0x80] sm:$0xff]
        %v1863 = vld [vmem:[%s13 + $0x88] sm:$0xff]
        %v1864 = vld [vmem:[%s13 + $0x90] sm:$0xff]
        %v1865 = vld [vmem:[%s13 + $0x98] sm:$0xff]
        %v1866 = vld [vmem:[%s13 + $0xa0] sm:$0xff]
        %v1867 = vld [vmem:[%s13 + $0xa8] sm:$0xff]
        %v1868 = vld [vmem:[%s13 + $0xb0] sm:$0xff]
        %v1869 = vld [vmem:[%s13 + $0xb8] sm:$0xff]
        %v1870 = vld [vmem:[%s13 + $0xc0] sm:$0xff]
        %v1871 = vld [vmem:[%s13 + $0xc8] sm:$0xff]
        %v1872 = vld [vmem:[%s13 + $0xd0] sm:$0xff]
        %v1873 = vld [vmem:[%s13 + $0xd8] sm:$0xff]
        %v1874 = vld [vmem:[%s13 + $0xe0] sm:$0xff]
        %v1875 = vld [vmem:[%s13 + $0xe8] sm:$0xff]
        %v1876 = vld [vmem:[%s13 + $0xf0] sm:$0xff]
        %v1877 = vld [vmem:[%s13 + $0xf8] sm:$0xff]
        %v1878 = vld [vmem:[%s13 + $0x100] sm:$0xff]
        %v1879 = vld [vmem:[%s13 + $0x108] sm:$0xff]
        %v1880 = vld [vmem:[%s13 + $0x110] sm:$0xff]
        %v1881 = vld [vmem:[%s13 + $0x118] sm:$0xff]
        %v1882 = vld [vmem:[%s13 + $0x120] sm:$0xff]
        %v1883 = vld [vmem:[%s13 + $0x128] sm:$0xff]
        %v1884 = vld [vmem:[%s13 + $0x130] sm:$0xff]
        %v1885 = vld [vmem:[%s13 + $0x138] sm:$0xff]
        %v1886 = vld [vmem:[%s13 + $0x140] sm:$0xff]
        %v1887 = vld [vmem:[%s13 + $0x148] sm:$0xff]
        %v1888 = vld [vmem:[%s13 + $0x150] sm:$0xff]
        %v1889 = vld [vmem:[%s13 + $0x158] sm:$0xff]
        %v1890 = vld [vmem:[%s13 + $0x160] sm:$0xff]
        %v1891 = vld [vmem:[%s13 + $0x168] sm:$0xff]
        %v1892 = vld [vmem:[%s13 + $0x170] sm:$0xff]
        %v1893 = vld [vmem:[%s13 + $0x178] sm:$0xff]
        %v1894 = vld [vmem:[%s13 + $0x180] sm:$0xff]
        %v1895 = vld [vmem:[%s13 + $0x188] sm:$0xff]
        %v1896 = vld [vmem:[%s13 + $0x190] sm:$0xff]
        %v1897 = vld [vmem:[%s13 + $0x198] sm:$0xff]
        %v1898 = vld [vmem:[%s13 + $0x1a0] sm:$0xff]
        %v1899 = vld [vmem:[%s13 + $0x1a8] sm:$0xff]
        %v1900 = vld [vmem:[%s13 + $0x1b0] sm:$0xff]
        %v1901 = vld [vmem:[%s13 + $0x1b8] sm:$0xff]
        %v1902 = vld [vmem:[%s13 + $0x1c0] sm:$0xff]
        %v1903 = vld [vmem:[%s13 + $0x1c8] sm:$0xff]
        %v1904 = vld [vmem:[%s13 + $0x1d0] sm:$0xff]
        %v1905 = vld [vmem:[%s13 + $0x1d8] sm:$0xff]
        %v1906 = vld [vmem:[%s13 + $0x1e0] sm:$0xff]
        %v1907 = vld [vmem:[%s13 + $0x1e8] sm:$0xff]
        %v1908 = vld [vmem:[%s13 + $0x1f0] sm:$0xff]
        %v1909 = vld [vmem:[%s13 + $0x1f8] sm:$0xff]
        %v1910 = vld [vmem:[%s14] sm:$0x1]
        %v1912 = vlaneseq
        %v1913 = vshrl.u32 %v1912, 7
        %v1914 = vsub.s32 0, %v1913
        %v1915 = vrot.slane %v1910, %v1914
        %1917 = vmatprep.subr.mxu0 0.0
        %1918 = vmatpush1.msra.mxu0 %v1861
        %1919 = vmatprep.subr.mxu0 0.0
        %1920 = vmatpush1.msra.mxu0 %v1860
        %1921 = vmatprep.subr.mxu0 0.0
        %1922 = vmatpush1.msra.mxu0 %v1859
        %1923 = vmatprep.subr.mxu0 0.0
        %1924 = vmatpush1.msra.mxu0 %v1858
        %1925 = vmatprep.subr.mxu0 0.0
        %1926 = vmatpush1.msra.mxu0 %v1857
        %1927 = vmatprep.subr.mxu0 0.0
        %1928 = vmatpush1.msra.mxu0 %v1856
        %1929 = vmatprep.subr.mxu0 0.0
        %1930 = vmatpush1.msra.mxu0 %v1855
        %1931 = vmatprep.subr.mxu0 0.0
        %1932 = vmatpush1.msra.mxu0 %v1854
        %1933 = vmatprep.subr.mxu0 0.0
        %1934 = vmatpush1.msra.mxu0 %v1853
        %1935 = vmatprep.subr.mxu0 0.0
        %1936 = vmatpush1.msra.mxu0 %v1852
        %1937 = vmatprep.subr.mxu0 0.0
        %1938 = vmatpush1.msra.mxu0 %v1851
        %1939 = vmatprep.subr.mxu0 0.0
        %1940 = vmatpush1.msra.mxu0 %v1850
        %1941 = vmatprep.subr.mxu0 0.0
        %1942 = vmatpush1.msra.mxu0 %v1849
        %1943 = vmatprep.subr.mxu0 0.0
        %1944 = vmatpush1.msra.mxu0 %v1848
        %1945 = vmatprep.subr.mxu0 0.0
        %1946 = vmatpush1.msra.mxu0 %v1847
        %1947 = vmatprep.subr.mxu0 0.0
        %1948 = vmatpush1.msra.mxu0 %v1846
        %1949 = vmatprep.subr.mxu0 0.0
        %1950 = vmatpush2.msra.mxu0 %v1877
        %1951 = vmatprep.subr.mxu0 0.0
        %1952 = vmatpush2.msra.mxu0 %v1876
        %1953 = vmatprep.subr.mxu0 0.0
        %1954 = vmatpush2.msra.mxu0 %v1875
        %1955 = vmatprep.subr.mxu0 0.0
        %1956 = vmatpush2.msra.mxu0 %v1874
        %1957 = vmatprep.subr.mxu0 0.0
        %1958 = vmatpush2.msra.mxu0 %v1873
        %1959 = vmatprep.subr.mxu0 0.0
        %1960 = vmatpush2.msra.mxu0 %v1872
        %1961 = vmatprep.subr.mxu0 0.0
        %1962 = vmatpush2.msra.mxu0 %v1871
        %1963 = vmatprep.subr.mxu0 0.0
        %1964 = vmatpush2.msra.mxu0 %v1870
        %1965 = vmatprep.subr.mxu0 0.0
        %1966 = vmatpush2.msra.mxu0 %v1869
        %1967 = vmatprep.subr.mxu0 0.0
        %1968 = vmatpush2.msra.mxu0 %v1868
        %1969 = vmatprep.subr.mxu0 0.0
        %1970 = vmatpush2.msra.mxu0 %v1867
        %1971 = vmatprep.subr.mxu0 0.0
        %1972 = vmatpush2.msra.mxu0 %v1866
        %1973 = vmatprep.subr.mxu0 0.0
        %1974 = vmatpush2.msra.mxu0 %v1865
        %1975 = vmatprep.subr.mxu0 0.0
        %1976 = vmatpush2.msra.mxu0 %v1864
        %1977 = vmatprep.subr.mxu0 0.0
        %1978 = vmatpush2.msra.mxu0 %v1863
        %1979 = vmatprep.subr.mxu0 0.0
        %1980 = vmatpush2.msra.mxu0 %v1862
        %1981 = vmatprep.mubr.f32.mxu0 %v1831
        %1982 = vmatmul.mubr.f32.gmra.mxu0 %v1830
        %v1983 = vpop.f32.mrf.mxu0
        %v1984 = vadd.f32 %v1915, %v1983
        %v1985 = vpop.f32.mrf.mxu0
        %1986 = vmatprep.mubr.f32.mxu0 %v1835
        %1987 = vmatmul.mubr.f32.gmra.mxu0 %v1834
        %v1988 = vpop.f32.mrf.mxu0
        %v1989 = vadd.f32 %v1915, %v1988
        %v1990 = vpop.f32.mrf.mxu0
        %1991 = vmatprep.mubr.f32.mxu0 %v1839
        %1992 = vmatmul.mubr.f32.gmra.mxu0 %v1838
        %v1993 = vpop.f32.mrf.mxu0
        %v1994 = vadd.f32 %v1915, %v1993
        %v1995 = vpop.f32.mrf.mxu0
        %1996 = vmatprep.mubr.f32.mxu0 %v1843
        %1997 = vmatmul.mubr.f32.gmra.mxu0 %v1842
        %v1998 = vpop.f32.mrf.mxu0
        %v1999 = vadd.f32 %v1915, %v1998
        %v2000 = vpop.f32.mrf.mxu0
        %2001 = vdwg.mxu0
        %2002 = vmatprep.subr.mxu0 0.0
        %2003 = vmatpush1.msra.mxu0 %v1893
        %2004 = vmatprep.subr.mxu0 0.0
        %2005 = vmatpush1.msra.mxu0 %v1892
        %2006 = vmatprep.subr.mxu0 0.0
        %2007 = vmatpush1.msra.mxu0 %v1891
        %2008 = vmatprep.subr.mxu0 0.0
        %2009 = vmatpush1.msra.mxu0 %v1890
        %2010 = vmatprep.subr.mxu0 0.0
        %2011 = vmatpush1.msra.mxu0 %v1889
        %2012 = vmatprep.subr.mxu0 0.0
        %2013 = vmatpush1.msra.mxu0 %v1888
        %2014 = vmatprep.subr.mxu0 0.0
        %2015 = vmatpush1.msra.mxu0 %v1887
        %2016 = vmatprep.subr.mxu0 0.0
        %2017 = vmatpush1.msra.mxu0 %v1886
        %2018 = vmatprep.subr.mxu0 0.0
        %2019 = vmatpush1.msra.mxu0 %v1885
        %2020 = vmatprep.subr.mxu0 0.0
        %2021 = vmatpush1.msra.mxu0 %v1884
        %2022 = vmatprep.subr.mxu0 0.0
        %2023 = vmatpush1.msra.mxu0 %v1883
        %2024 = vmatprep.subr.mxu0 0.0
        %2025 = vmatpush1.msra.mxu0 %v1882
        %2026 = vmatprep.subr.mxu0 0.0
        %2027 = vmatpush1.msra.mxu0 %v1881
        %2028 = vmatprep.subr.mxu0 0.0
        %2029 = vmatpush1.msra.mxu0 %v1880
        %2030 = vmatprep.subr.mxu0 0.0
        %2031 = vmatpush1.msra.mxu0 %v1879
        %2032 = vmatprep.subr.mxu0 0.0
        %2033 = vmatpush1.msra.mxu0 %v1878
        %2034 = vmatprep.subr.mxu0 0.0
        %2035 = vmatpush2.msra.mxu0 %v1909
        %2036 = vmatprep.subr.mxu0 0.0
        %2037 = vmatpush2.msra.mxu0 %v1908
        %2038 = vmatprep.subr.mxu0 0.0
        %2039 = vmatpush2.msra.mxu0 %v1907
        %2040 = vmatprep.subr.mxu0 0.0
        %2041 = vmatpush2.msra.mxu0 %v1906
        %2042 = vmatprep.subr.mxu0 0.0
        %2043 = vmatpush2.msra.mxu0 %v1905
        %2044 = vmatprep.subr.mxu0 0.0
        %2045 = vmatpush2.msra.mxu0 %v1904
        %2046 = vmatprep.subr.mxu0 0.0
        %2047 = vmatpush2.msra.mxu0 %v1903
        %2048 = vmatprep.subr.mxu0 0.0
        %2049 = vmatpush2.msra.mxu0 %v1902
        %2050 = vmatprep.subr.mxu0 0.0
        %2051 = vmatpush2.msra.mxu0 %v1901
        %2052 = vmatprep.subr.mxu0 0.0
        %2053 = vmatpush2.msra.mxu0 %v1900
        %2054 = vmatprep.subr.mxu0 0.0
        %2055 = vmatpush2.msra.mxu0 %v1899
        %2056 = vmatprep.subr.mxu0 0.0
        %2057 = vmatpush2.msra.mxu0 %v1898
        %2058 = vmatprep.subr.mxu0 0.0
        %2059 = vmatpush2.msra.mxu0 %v1897
        %2060 = vmatprep.subr.mxu0 0.0
        %2061 = vmatpush2.msra.mxu0 %v1896
        %2062 = vmatprep.subr.mxu0 0.0
        %2063 = vmatpush2.msra.mxu0 %v1895
        %2064 = vmatprep.subr.mxu0 0.0
        %2065 = vmatpush2.msra.mxu0 %v1894
        %2066 = vmatprep.mubr.f32.mxu0 %v1833
        %2067 = vmatmul.mubr.f32.gmra.mxu0 %v1832
        %v2068 = vpop.f32.mrf.mxu0
        %v2069 = vadd.f32 %v1984, %v2068
        %v2070 = vpop.f32.mrf.mxu0
        %2071 = vmatprep.mubr.f32.mxu0 %v1837
        %2072 = vmatmul.mubr.f32.gmra.mxu0 %v1836
        %v2073 = vpop.f32.mrf.mxu0
        %v2074 = vadd.f32 %v1989, %v2073
        %v2075 = vpop.f32.mrf.mxu0
        %2076 = vmatprep.mubr.f32.mxu0 %v1841
        %2077 = vmatmul.mubr.f32.gmra.mxu0 %v1840
        %v2078 = vpop.f32.mrf.mxu0
        %v2079 = vadd.f32 %v1994, %v2078
        %v2080 = vpop.f32.mrf.mxu0
        %2081 = vmatprep.mubr.f32.mxu0 %v1845
        %2082 = vmatmul.mubr.f32.gmra.mxu0 %v1844
        %v2083 = vpop.f32.mrf.mxu0
        %v2084 = vadd.f32 %v1999, %v2083
        %v2085 = vpop.f32.mrf.mxu0
        %2086 = vdwg.mxu0
        %2087 = vst [vmem:[%s508] sm:$0xff] %v2069
        %2088 = vst [vmem:[%s508 + $0x8] sm:$0xff] %v2074
        %2089 = vst [vmem:[%s508 + $0x10] sm:$0xff] %v2079
        %2090 = vst [vmem:[%s508 + $0x18] sm:$0xff] %v2084
      $region100: #{nn_regression_forward.1} parent=79 // pred_fallthru
        _
      %s2091 = smul.u32 4, %s31
      %p2092 = scmp.lt.s32.totalorder %s2091, 7
      %s2093 = scalar_select %p2092, %s2091, 7
      %s2094 = smul.addr %s2093, 8
      %s2095 = scalar_lea.vmem %s15, %s2094
      // Predicated region
      $region101: #{nn_regression_forward.1} parent=79 // pred_check
        %p2096 = pneg %p376
      $region102: #{nn_regression_forward.1} parent=79 // pred_check_branch
        %2098 = sbr.rel (%p2096) target = $region104
      $region103: #{nn_regression_forward.1} parent=79 // pred_region
        %s2099 = smul.u32 4, %s31
      $region104: #{nn_regression_forward.1} parent=79 // pred_fallthru
        _
    $region80: #{nn_regression_forward.1} parent=5 // pred_fallthru
      _
    %p2100 = scmp.le.s32.totalorder 2, %s21
    // Predicated region
    $region105: #{nn_regression_forward.1} parent=5 // pred_check
      %p2101 = pneg %p2100
    $region106: #{nn_regression_forward.1} parent=5 // pred_check_branch
      %2103 = sbr.rel (%p2101) target = $region108
    $region107: #{nn_regression_forward.1} parent=5 // pred_region
      %s2104 = ssub.s32 %s21, 2
      // Predicated region
      $region109: #{nn_regression_forward.1} parent=107 // pred_check
        %p2105 = pneg %p382
      $region110: #{nn_regression_forward.1} parent=107 // pred_check_branch
        %2107 = sbr.rel (%p2105) target = $region112
      $region111: #{nn_regression_forward.1} parent=107 // pred_region
        %s2108 = smul.u32 4, %s33
        %p2109 = scmp.lt.s32.totalorder %s2108, 7
        %s2110 = scalar_select %p2109, %s2108, 7
        %s2111 = smul.addr %s2110, 8
        %s2112 = scalar_lea.vmem %s15, %s2111
      $region112: #{nn_regression_forward.1} parent=107 // pred_fallthru
        _
    $region108: #{nn_regression_forward.1} parent=5 // pred_fallthru
      _
  $region6: #{nn_regression_forward.1} parent=0 // loop_footer
    %s25 = sadd.s32 1, %s21
  $region7: #{nn_regression_forward.1} parent=0 // loop_footer_branch
    %20 = sbr.rel target = $region3
  $region8: #{nn_regression_forward.1} parent=0 // loop_exit
    _

</llo_original>
